<compile_context>
chip_gen: v6e
topology: v6e:2x2x1
jax: 0.10.0
libtpu: 0.0.40
codegen_flags: <defaults>
</compile_context>

<pallas_src>
import jax
import jax.numpy as jnp
from jax.experimental import pallas as pl
from jax.experimental.pallas import tpu as pltpu


def _round_up(x, m):
    return ((x + m - 1) // m) * m


def make_attention_kernel(n_true, matmul_dtype=jnp.float32):
    """n_true: real (unpadded) number of pixels N, for masking padded lanes."""

    def kernel(enc_ref, dec_ref, we_ref, wd_ref, bc_ref, wf_ref,
               awe_ref, alpha_ref):
        # Per-grid-step shapes:
        #   enc_ref   (TB, Np, Ep)     dec_ref (TB, Dp)
        #   we_ref    (Ep, Ap)         wd_ref  (Dp, Ap)
        #   bc_ref    (1, Ap)          combined bias be + bd
        #   wf_ref    (1, Ap)          full_att weight as a row (bias dropped)
        #   awe_ref   (TB, Ep)         alpha_ref (TB, Np)
        TB, Np, Ep = enc_ref.shape
        Ap = we_ref.shape[1]
        cast = lambda x: x.astype(matmul_dtype)

        enc = enc_ref[...]                                        # (TB, Np, Ep) f32

        # encoder_att: one plain 2-D MXU matmul on the flattened (TB*Np, Ep) slab.
        enc2 = enc.reshape(TB * Np, Ep)
        att1 = jnp.dot(cast(enc2), cast(we_ref[...]),
                       preferred_element_type=jnp.float32)        # (TB*Np, Ap)
        att1 = att1.reshape(TB, Np, Ap)

        # decoder_att + combined bias (be + bd) added once.
        att2 = jnp.dot(cast(dec_ref[...]), cast(wd_ref[...]),
                       preferred_element_type=jnp.float32) + bc_ref[...]   # (TB, Ap)

        # relu(att1 + att2.unsqueeze(1)); full_att fused on VPU (lane reduce over A).
        h = jnp.maximum(att1 + att2[:, None, :], 0.0)             # (TB, Np, Ap) f32
        e = jnp.sum(h * wf_ref[...][None, :, :], axis=-1)         # (TB, Np), N on lanes
        # NOTE: full_att bias omitted -- softmax is shift-invariant, it cancels.

        # Mask padded pixels, softmax over the lane axis (torch dim=1).
        lane = jax.lax.broadcasted_iota(jnp.int32, (TB, Np), 1)
        e = jnp.where(lane < n_true, e, -jnp.inf)
        m = jnp.max(e, axis=-1, keepdims=True)
        p = jnp.exp(e - m)
        s = jnp.sum(p, axis=-1, keepdims=True)
        alpha = p * pl.reciprocal(s, approx=False)                # (TB, Np)
        alpha_ref[...] = alpha                                    # lane-dense store

        # attention_weighted_encoding on the MXU: (TB,1,Np) x (TB,Np,Ep) -> (TB,1,Ep)
        awe = jnp.einsum('bqn,bne->bqe', cast(alpha[:, None, :]), cast(enc),
                         preferred_element_type=jnp.float32)
        awe_ref[...] = awe[:, 0, :]                               # (TB, Ep) lane-dense

    return kernel


def attention_pallas(encoder_out, decoder_hidden, params,
                     matmul_dtype=jnp.float32):
    """encoder_out (B, N, E) f32, decoder_hidden (B, D) f32.

    Set matmul_dtype=jnp.bfloat16 on v6e/v7x at production sizes (f32 accumulation
    is kept via preferred_element_type); keep f32 for tight-tolerance checks.
    """
    B, N, E = encoder_out.shape
    D = decoder_hidden.shape[1]
    we, be, wd, bd, wf, bf = params      # (E,A),(1,A),(D,A),(1,A),(A,1),(1,1)
    A = we.shape[1]
    del bf  # mathematically a no-op for both outputs (softmax shift-invariance)

    # --- pad to TPU-friendly layouts (sublane multiple of 8, lane-dense 128) ---
    TB = 8                                       # batch rows per grid step
    B_pad = _round_up(B, TB)
    N_pad = _round_up(N, 128)
    E_pad = _round_up(E, 128)
    D_pad = _round_up(D, 128)
    A_pad = _round_up(A, 128)

    enc_p = jnp.pad(encoder_out,
                    ((0, B_pad - B), (0, N_pad - N), (0, E_pad - E)))
    dec_p = jnp.pad(decoder_hidden, ((0, B_pad - B), (0, D_pad - D)))
    we_p = jnp.pad(we, ((0, E_pad - E), (0, A_pad - A)))   # zero rows/cols: no effect
    wd_p = jnp.pad(wd, ((0, D_pad - D), (0, A_pad - A)))
    bc_p = jnp.pad(be + bd, ((0, 0), (0, A_pad - A)))      # combined bias (1, A_pad)
    wf_p = jnp.pad(wf.reshape(1, A), ((0, 0), (0, A_pad - A)))

    grid = (B_pad // TB,)
    out_shape = (
        jax.ShapeDtypeStruct((B_pad, E_pad), jnp.float32),   # attention-weighted enc
        jax.ShapeDtypeStruct((B_pad, N_pad), jnp.float32),   # alpha
    )

    rep = lambda shape: pl.BlockSpec(shape, lambda b: tuple(0 for _ in shape))

    awe_p, alpha_p = pl.pallas_call(
        make_attention_kernel(N, matmul_dtype),
        out_shape=out_shape,
        grid_spec=pltpu.PrefetchScalarGridSpec(
            num_scalar_prefetch=0,
            grid=grid,
            in_specs=[
                pl.BlockSpec((TB, N_pad, E_pad), lambda b: (b, 0, 0)),  # encoder_out
                pl.BlockSpec((TB, D_pad), lambda b: (b, 0)),            # decoder_hidden
                rep((E_pad, A_pad)),                                    # encoder_att W
                rep((D_pad, A_pad)),                                    # decoder_att W
                rep((1, A_pad)),                                        # combined bias
                rep((1, A_pad)),                                        # full_att W row
            ],
            out_specs=[
                pl.BlockSpec((TB, E_pad), lambda b: (b, 0)),
                pl.BlockSpec((TB, N_pad), lambda b: (b, 0)),
            ],
        ),
        compiler_params=pltpu.CompilerParams(
            dimension_semantics=("parallel",),     # shards batch tiles across v7x TCs
            vmem_limit_bytes=96 * 1024 * 1024),    # headroom for big N*E tiles
    )(enc_p, dec_p, we_p, wd_p, bc_p, wf_p)

    return awe_p[:B, :E], alpha_p[:B, :N]


def attention_reference(encoder_out, decoder_hidden, params):
    we, be, wd, bd, wf, bf = params
    att1 = encoder_out @ we + be                       # (B, N, A)
    att2 = decoder_hidden @ wd + bd                    # (B, A)
    att = (jnp.maximum(att1 + att2[:, None, :], 0.0) @ wf + bf)[..., 0]   # (B, N)
    alpha = jax.nn.softmax(att, axis=1)
    awe = jnp.sum(encoder_out * alpha[..., None], axis=1)
    return awe, alpha


if __name__ == "__main__":
    # Small shapes implied by the forward pass.
    B, N = 2, 16            # batch, num_pixels
    E, D, A = 32, 32, 32    # encoder_dim, decoder_dim, attention_dim

    key = jax.random.PRNGKey(0)
    k = jax.random.split(key, 8)

    encoder_out = jax.random.normal(k[0], (B, N, E), dtype=jnp.float32)
    decoder_hidden = jax.random.normal(k[1], (B, D), dtype=jnp.float32)

    # Deterministic parameter init (stored as (in_dim, out_dim) / (1, out_dim)).
    we = jax.random.normal(k[2], (E, A), dtype=jnp.float32) * 0.1
    be = jax.random.normal(k[3], (1, A), dtype=jnp.float32) * 0.1
    wd = jax.random.normal(k[4], (D, A), dtype=jnp.float32) * 0.1
    bd = jax.random.normal(k[5], (1, A), dtype=jnp.float32) * 0.1
    wf = jax.random.normal(k[6], (A, 1), dtype=jnp.float32) * 0.1
    bf = jax.random.normal(k[7], (1, 1), dtype=jnp.float32) * 0.1
    params = (we, be, wd, bd, wf, bf)

    run = jax.jit(attention_pallas)
    awe, alpha = run(encoder_out, decoder_hidden, params)
    jax.block_until_ready((awe, alpha))

    awe_ref, alpha_ref = attention_reference(encoder_out, decoder_hidden, params)
    assert jnp.allclose(awe, awe_ref, atol=1e-5, rtol=1e-5)
    assert jnp.allclose(alpha, alpha_ref, atol=1e-5, rtol=1e-5)

    print("KERNEL_OK")
</pallas_src>

<mosaic_0001>
module attributes {stable_mosaic.version = 11 : i64} {
  func.func @kernel(%arg0: i32, %arg1: memref<8x128x128xf32, #tpu.memory_space<vmem>>, %arg2: memref<8x128xf32, #tpu.memory_space<vmem>>, %arg3: memref<128x128xf32, #tpu.memory_space<vmem>>, %arg4: memref<128x128xf32, #tpu.memory_space<vmem>>, %arg5: memref<1x128xf32, #tpu.memory_space<vmem>>, %arg6: memref<1x128xf32, #tpu.memory_space<vmem>>, %arg7: memref<8x128xf32, #tpu.memory_space<vmem>>, %arg8: memref<8x128xf32, #tpu.memory_space<vmem>>) attributes {dimension_semantics = [#tpu.dimension_semantics<parallel>], iteration_bounds = array<i64: 1>, scalar_prefetch = 0 : i64, scratch_operands = 0 : i64, tpu.core_type = #tpu.core_type<tc>, window_params = [{transform_indices = @transform_0, window_bounds = array<i64: 8, 128, 128>}, {transform_indices = @transform_1, window_bounds = array<i64: 8, 128>}, {pipeline_mode = #tpu.pipeline_mode<synchronous>, transform_indices = @transform_2, window_bounds = array<i64: 128, 128>}, {pipeline_mode = #tpu.pipeline_mode<synchronous>, transform_indices = @transform_3, window_bounds = array<i64: 128, 128>}, {pipeline_mode = #tpu.pipeline_mode<synchronous>, transform_indices = @transform_4, window_bounds = array<i64: 1, 128>}, {pipeline_mode = #tpu.pipeline_mode<synchronous>, transform_indices = @transform_5, window_bounds = array<i64: 1, 128>}, {transform_indices = @transform_6, window_bounds = array<i64: 8, 128>}, {transform_indices = @transform_7, window_bounds = array<i64: 8, 128>}]} {
    %c0 = arith.constant 0 : index
    %c0_0 = arith.constant 0 : index
    %c0_1 = arith.constant 0 : index
    %0 = vector.load %arg1[%c0, %c0_0, %c0_1] : memref<8x128x128xf32, #tpu.memory_space<vmem>>, vector<8x128x128xf32>
    %1 = vector.shape_cast %0 : vector<8x128x128xf32> to vector<1024x128xf32>
    %c0_2 = arith.constant 0 : index
    %c0_3 = arith.constant 0 : index
    %2 = vector.load %arg3[%c0_2, %c0_3] : memref<128x128xf32, #tpu.memory_space<vmem>>, vector<128x128xf32>
    %cst = arith.constant dense<0.000000e+00> : vector<1024x128xf32>
    %3 = tpu.matmul %1, %2, %cst {dimension_numbers = #tpu.dot_dimension_numbers<[1], [0], [0], [1], [0, 0, 1, 1], [], []>} : vector<1024x128xf32>, vector<128x128xf32>, vector<1024x128xf32> -> vector<1024x128xf32>
    %4 = vector.shape_cast %3 : vector<1024x128xf32> to vector<8x128x128xf32>
    %c0_4 = arith.constant 0 : index
    %c0_5 = arith.constant 0 : index
    %5 = vector.load %arg2[%c0_4, %c0_5] : memref<8x128xf32, #tpu.memory_space<vmem>>, vector<8x128xf32>
    %c0_6 = arith.constant 0 : index
    %c0_7 = arith.constant 0 : index
    %6 = vector.load %arg4[%c0_6, %c0_7] : memref<128x128xf32, #tpu.memory_space<vmem>>, vector<128x128xf32>
    %cst_8 = arith.constant dense<0.000000e+00> : vector<8x128xf32>
    %7 = tpu.matmul %5, %6, %cst_8 {dimension_numbers = #tpu.dot_dimension_numbers<[1], [0], [0], [1], [0, 0, 1, 1], [], []>} : vector<8x128xf32>, vector<128x128xf32>, vector<8x128xf32> -> vector<8x128xf32>
    %c0_9 = arith.constant 0 : index
    %c0_10 = arith.constant 0 : index
    %8 = vector.load %arg5[%c0_9, %c0_10] : memref<1x128xf32, #tpu.memory_space<vmem>>, vector<1x128xf32>
    %9 = vector.broadcast %8 : vector<1x128xf32> to vector<8x128xf32>
    %10 = arith.addf %7, %9 : vector<8x128xf32>
    %11 = vector.shape_cast %10 : vector<8x128xf32> to vector<8x1x128xf32>
    %12 = vector.broadcast %11 : vector<8x1x128xf32> to vector<8x128x128xf32>
    %13 = arith.addf %4, %12 : vector<8x128x128xf32>
    %cst_11 = arith.constant 0.000000e+00 : f32
    %14 = vector.broadcast %cst_11 : f32 to vector<8x128x128xf32>
    %15 = arith.maximumf %13, %14 : vector<8x128x128xf32>
    %c0_12 = arith.constant 0 : index
    %c0_13 = arith.constant 0 : index
    %16 = vector.load %arg6[%c0_12, %c0_13] : memref<1x128xf32, #tpu.memory_space<vmem>>, vector<1x128xf32>
    %17 = vector.shape_cast %16 : vector<1x128xf32> to vector<1x1x128xf32>
    %18 = vector.broadcast %17 : vector<1x1x128xf32> to vector<8x128x128xf32>
    %19 = arith.mulf %15, %18 : vector<8x128x128xf32>
    %cst_14 = arith.constant dense<0.000000e+00> : vector<8x128xf32>
    %20 = vector.multi_reduction <add>, %19, %cst_14 [2] : vector<8x128x128xf32> to vector<8x128xf32>
    %21 = tpu.iota {dimensions = array<i32: 1>} : vector<8x128xi32>
    %c16_i32 = arith.constant 16 : i32
    %22 = vector.broadcast %c16_i32 : i32 to vector<8x128xi32>
    %23 = arith.cmpi slt, %21, %22 : vector<8x128xi32>
    %cst_15 = arith.constant 0xFF800000 : f32
    %24 = vector.broadcast %cst_15 : f32 to vector<8x128xf32>
    %25 = arith.select %23, %20, %24 : vector<8x128xi1>, vector<8x128xf32>
    %cst_16 = arith.constant dense<0xFF800000> : vector<8xf32>
    %26 = vector.multi_reduction <maximumf>, %25, %cst_16 [1] : vector<8x128xf32> to vector<8xf32>
    %27 = vector.shape_cast %26 : vector<8xf32> to vector<8x1xf32>
    %28 = vector.broadcast %27 : vector<8x1xf32> to vector<8x128xf32>
    %29 = arith.subf %25, %28 : vector<8x128xf32>
    %30 = math.exp %29 : vector<8x128xf32>
    %cst_17 = arith.constant dense<0.000000e+00> : vector<8xf32>
    %31 = vector.multi_reduction <add>, %30, %cst_17 [1] : vector<8x128xf32> to vector<8xf32>
    %32 = vector.shape_cast %31 : vector<8xf32> to vector<8x1xf32>
    %33 = tpu.reciprocal %32 : vector<8x1xf32> -> vector<8x1xf32>
    %34 = vector.broadcast %33 : vector<8x1xf32> to vector<8x128xf32>
    %35 = arith.mulf %30, %34 : vector<8x128xf32>
    %c0_18 = arith.constant 0 : index
    %c0_19 = arith.constant 0 : index
    %36 = vector.load %arg8[%c0_18, %c0_19] : memref<8x128xf32, #tpu.memory_space<vmem>>, vector<8x128xf32>
    tpu.vector_store %arg8[%c0_18, %c0_19], %35 {strides = array<i32>} : memref<8x128xf32, #tpu.memory_space<vmem>>, vector<8x128xf32>,
    %37 = vector.shape_cast %35 : vector<8x128xf32> to vector<8x1x128xf32>
    "tpu.trace_start"() <{level = 10 : i32, message = "bqn,bne->bqe"}> : () -> ()
    %cst_20 = arith.constant dense<0.000000e+00> : vector<8x1x128xf32>
    %38 = tpu.matmul %37, %0, %cst_20 {dimension_numbers = #tpu.dot_dimension_numbers<[2], [1], [1], [2], [0, 0, 0, 1, 1, 2], [0], [0]>} : vector<8x1x128xf32>, vector<8x128x128xf32>, vector<8x1x128xf32> -> vector<8x1x128xf32>
    "tpu.trace_stop"() : () -> ()
    %39 = vector.shape_cast %38 : vector<8x1x128xf32> to vector<8x128xf32>
    %c0_21 = arith.constant 0 : index
    %c0_22 = arith.constant 0 : index
    %40 = vector.load %arg7[%c0_21, %c0_22] : memref<8x128xf32, #tpu.memory_space<vmem>>, vector<8x128xf32>
    tpu.vector_store %arg7[%c0_21, %c0_22], %39 {strides = array<i32>} : memref<8x128xf32, #tpu.memory_space<vmem>>, vector<8x128xf32>,
    return
  }
  func.func @transform_0(%arg0: i32) -> (i32, i32, i32) {
    %c0_i32 = arith.constant 0 : i32
    %c0_i32_0 = arith.constant 0 : i32
    %c0_i32_1 = arith.constant 0 : i32
    return %arg0, %c0_i32, %c0_i32_0 : i32, i32, i32
  }
  func.func @transform_1(%arg0: i32) -> (i32, i32) {
    %c0_i32 = arith.constant 0 : i32
    %c0_i32_0 = arith.constant 0 : i32
    return %arg0, %c0_i32 : i32, i32
  }
  func.func @transform_2(%arg0: i32) -> (i32, i32) {
    %c0_i32 = arith.constant 0 : i32
    %c0_i32_0 = arith.constant 0 : i32
    %c0_i32_1 = arith.constant 0 : i32
    return %c0_i32, %c0_i32_0 : i32, i32
  }
  func.func @transform_3(%arg0: i32) -> (i32, i32) {
    %c0_i32 = arith.constant 0 : i32
    %c0_i32_0 = arith.constant 0 : i32
    %c0_i32_1 = arith.constant 0 : i32
    return %c0_i32, %c0_i32_0 : i32, i32
  }
  func.func @transform_4(%arg0: i32) -> (i32, i32) {
    %c0_i32 = arith.constant 0 : i32
    %c0_i32_0 = arith.constant 0 : i32
    %c0_i32_1 = arith.constant 0 : i32
    return %c0_i32, %c0_i32_0 : i32, i32
  }
  func.func @transform_5(%arg0: i32) -> (i32, i32) {
    %c0_i32 = arith.constant 0 : i32
    %c0_i32_0 = arith.constant 0 : i32
    %c0_i32_1 = arith.constant 0 : i32
    return %c0_i32, %c0_i32_0 : i32, i32
  }
  func.func @transform_6(%arg0: i32) -> (i32, i32) {
    %c0_i32 = arith.constant 0 : i32
    %c0_i32_0 = arith.constant 0 : i32
    return %arg0, %c0_i32 : i32, i32
  }
  func.func @transform_7(%arg0: i32) -> (i32, i32) {
    %c0_i32 = arith.constant 0 : i32
    %c0_i32_0 = arith.constant 0 : i32
    return %arg0, %c0_i32 : i32, i32
  }
}

</mosaic_0001>

<llo_original>
// kernel: attention_pallas.1
$region0: #{attention_pallas.1}
  #allocation0 [shape = 'u32[]', space=smem, size = 0x4, offset = 0x4, fixed_abs, tag = 'smem constant byte address 0x4 - core index']
  #allocation1 [shape = 'u32[144,128]{1,0:T(1,128)}', space=vmem, size = 0x12000, scoped, tag = 'internal scratch']
  %s0 = inlined_call_operand.vmem [shape: f32[8,128,128], index: 0, kind: input, shape index: {}]
  %s1 = inlined_call_operand.vmem [shape: f32[8,128], index: 1, kind: input, shape index: {}]
  %s2 = inlined_call_operand.vmem [shape: f32[128,128], index: 2, kind: input, shape index: {}]
  %s3 = inlined_call_operand.vmem [shape: f32[128,128], index: 3, kind: input, shape index: {}]
  %s4 = inlined_call_operand.vmem [shape: f32[1,128], index: 4, kind: input, shape index: {}]
  %s5 = inlined_call_operand.vmem [shape: f32[1,128], index: 5, kind: input, shape index: {}]
  %s6 = inlined_call_operand.vmem [shape: f32[8,128], index: 6, kind: output, shape index: {0}]
  %s7 = inlined_call_operand.vmem [shape: f32[8,128], index: 7, kind: output, shape index: {1}]
  %8 = xla_tuple %s6, %s7
  %s9 = sld [smem:[#allocation0]]
  $region42: #{attention_pallas.1} parent=0
    _
  %s11 = ssub.s32 1, %s9
  %s12 = scalar_select 0, %s11, %s9
  // Predicated region
  $region2: #{attention_pallas.1} parent=0 // pred_check
    _
  $region3: #{attention_pallas.1} parent=0 // pred_check_branch
    %14 = sbr.rel (0) target = $region5
  $region4: #{attention_pallas.1} parent=0 // pred_region
    _
  $region5: #{attention_pallas.1} parent=0 // pred_fallthru
    _
  // Predicated region
  $region6: #{attention_pallas.1} parent=0 // pred_check
    _
  $region7: #{attention_pallas.1} parent=0 // pred_check_branch
    %16 = sbr.rel (0) target = $region9
  $region8: #{attention_pallas.1} parent=0 // pred_region
    _
  $region9: #{attention_pallas.1} parent=0 // pred_fallthru
    _
  // Predicated region
  $region10: #{attention_pallas.1} parent=0 // pred_check
    _
  $region11: #{attention_pallas.1} parent=0 // pred_check_branch
    %18 = sbr.rel (0) target = $region13
  $region12: #{attention_pallas.1} parent=0 // pred_region
    _
  $region13: #{attention_pallas.1} parent=0 // pred_fallthru
    _
  // Predicated region
  $region14: #{attention_pallas.1} parent=0 // pred_check
    _
  $region15: #{attention_pallas.1} parent=0 // pred_check_branch
    %20 = sbr.rel (0) target = $region17
  $region16: #{attention_pallas.1} parent=0 // pred_region
    _
  $region17: #{attention_pallas.1} parent=0 // pred_fallthru
    _
  // Predicated region
  $region18: #{attention_pallas.1} parent=0 // pred_check
    _
  $region19: #{attention_pallas.1} parent=0 // pred_check_branch
    %22 = sbr.rel (0) target = $region21
  $region20: #{attention_pallas.1} parent=0 // pred_region
    _
  $region21: #{attention_pallas.1} parent=0 // pred_fallthru
    _
  // Predicated region
  $region22: #{attention_pallas.1} parent=0 // pred_check
    _
  $region23: #{attention_pallas.1} parent=0 // pred_check_branch
    %24 = sbr.rel (0) target = $region25
  $region24: #{attention_pallas.1} parent=0 // pred_region
    _
  $region25: #{attention_pallas.1} parent=0 // pred_fallthru
    _
  %v25 = vld [vmem:[%s0] sm:$0xff]
  %v26 = vld [vmem:[%s0 + $0x8] sm:$0xff]
  %v27 = vld [vmem:[%s0 + $0x10] sm:$0xff]
  %v28 = vld [vmem:[%s0 + $0x18] sm:$0xff]
  %v29 = vld [vmem:[%s0 + $0x20] sm:$0xff]
  %v30 = vld [vmem:[%s0 + $0x28] sm:$0xff]
  %v31 = vld [vmem:[%s0 + $0x30] sm:$0xff]
  %v32 = vld [vmem:[%s0 + $0x38] sm:$0xff]
  %v33 = vld [vmem:[%s0 + $0x40] sm:$0xff]
  %v34 = vld [vmem:[%s0 + $0x48] sm:$0xff]
  %v35 = vld [vmem:[%s0 + $0x50] sm:$0xff]
  %v36 = vld [vmem:[%s0 + $0x58] sm:$0xff]
  %v37 = vld [vmem:[%s0 + $0x60] sm:$0xff]
  %v38 = vld [vmem:[%s0 + $0x68] sm:$0xff]
  %v39 = vld [vmem:[%s0 + $0x70] sm:$0xff]
  %v40 = vld [vmem:[%s0 + $0x78] sm:$0xff]
  %v41 = vld [vmem:[%s0 + $0x80] sm:$0xff]
  %v42 = vld [vmem:[%s0 + $0x88] sm:$0xff]
  %v43 = vld [vmem:[%s0 + $0x90] sm:$0xff]
  %v44 = vld [vmem:[%s0 + $0x98] sm:$0xff]
  %v45 = vld [vmem:[%s0 + $0xa0] sm:$0xff]
  %v46 = vld [vmem:[%s0 + $0xa8] sm:$0xff]
  %v47 = vld [vmem:[%s0 + $0xb0] sm:$0xff]
  %v48 = vld [vmem:[%s0 + $0xb8] sm:$0xff]
  %v49 = vld [vmem:[%s0 + $0xc0] sm:$0xff]
  %v50 = vld [vmem:[%s0 + $0xc8] sm:$0xff]
  %v51 = vld [vmem:[%s0 + $0xd0] sm:$0xff]
  %v52 = vld [vmem:[%s0 + $0xd8] sm:$0xff]
  %v53 = vld [vmem:[%s0 + $0xe0] sm:$0xff]
  %v54 = vld [vmem:[%s0 + $0xe8] sm:$0xff]
  %v55 = vld [vmem:[%s0 + $0xf0] sm:$0xff]
  %v56 = vld [vmem:[%s0 + $0xf8] sm:$0xff]
  %v57 = vld [vmem:[%s0 + $0x100] sm:$0xff]
  %v58 = vld [vmem:[%s0 + $0x108] sm:$0xff]
  %v59 = vld [vmem:[%s0 + $0x110] sm:$0xff]
  %v60 = vld [vmem:[%s0 + $0x118] sm:$0xff]
  %v61 = vld [vmem:[%s0 + $0x120] sm:$0xff]
  %v62 = vld [vmem:[%s0 + $0x128] sm:$0xff]
  %v63 = vld [vmem:[%s0 + $0x130] sm:$0xff]
  %v64 = vld [vmem:[%s0 + $0x138] sm:$0xff]
  %v65 = vld [vmem:[%s0 + $0x140] sm:$0xff]
  %v66 = vld [vmem:[%s0 + $0x148] sm:$0xff]
  %v67 = vld [vmem:[%s0 + $0x150] sm:$0xff]
  %v68 = vld [vmem:[%s0 + $0x158] sm:$0xff]
  %v69 = vld [vmem:[%s0 + $0x160] sm:$0xff]
  %v70 = vld [vmem:[%s0 + $0x168] sm:$0xff]
  %v71 = vld [vmem:[%s0 + $0x170] sm:$0xff]
  %v72 = vld [vmem:[%s0 + $0x178] sm:$0xff]
  %v73 = vld [vmem:[%s0 + $0x180] sm:$0xff]
  %v74 = vld [vmem:[%s0 + $0x188] sm:$0xff]
  %v75 = vld [vmem:[%s0 + $0x190] sm:$0xff]
  %v76 = vld [vmem:[%s0 + $0x198] sm:$0xff]
  %v77 = vld [vmem:[%s0 + $0x1a0] sm:$0xff]
  %v78 = vld [vmem:[%s0 + $0x1a8] sm:$0xff]
  %v79 = vld [vmem:[%s0 + $0x1b0] sm:$0xff]
  %v80 = vld [vmem:[%s0 + $0x1b8] sm:$0xff]
  %v81 = vld [vmem:[%s0 + $0x1c0] sm:$0xff]
  %v82 = vld [vmem:[%s0 + $0x1c8] sm:$0xff]
  %v83 = vld [vmem:[%s0 + $0x1d0] sm:$0xff]
  %v84 = vld [vmem:[%s0 + $0x1d8] sm:$0xff]
  %v85 = vld [vmem:[%s0 + $0x1e0] sm:$0xff]
  %v86 = vld [vmem:[%s0 + $0x1e8] sm:$0xff]
  %v87 = vld [vmem:[%s0 + $0x1f0] sm:$0xff]
  %v88 = vld [vmem:[%s0 + $0x1f8] sm:$0xff]
  %v89 = vld [vmem:[%s0 + $0x200] sm:$0xff]
  %v90 = vld [vmem:[%s0 + $0x208] sm:$0xff]
  %v91 = vld [vmem:[%s0 + $0x210] sm:$0xff]
  %v92 = vld [vmem:[%s0 + $0x218] sm:$0xff]
  %v93 = vld [vmem:[%s0 + $0x220] sm:$0xff]
  %v94 = vld [vmem:[%s0 + $0x228] sm:$0xff]
  %v95 = vld [vmem:[%s0 + $0x230] sm:$0xff]
  %v96 = vld [vmem:[%s0 + $0x238] sm:$0xff]
  %v97 = vld [vmem:[%s0 + $0x240] sm:$0xff]
  %v98 = vld [vmem:[%s0 + $0x248] sm:$0xff]
  %v99 = vld [vmem:[%s0 + $0x250] sm:$0xff]
  %v100 = vld [vmem:[%s0 + $0x258] sm:$0xff]
  %v101 = vld [vmem:[%s0 + $0x260] sm:$0xff]
  %v102 = vld [vmem:[%s0 + $0x268] sm:$0xff]
  %v103 = vld [vmem:[%s0 + $0x270] sm:$0xff]
  %v104 = vld [vmem:[%s0 + $0x278] sm:$0xff]
  %v105 = vld [vmem:[%s0 + $0x280] sm:$0xff]
  %v106 = vld [vmem:[%s0 + $0x288] sm:$0xff]
  %v107 = vld [vmem:[%s0 + $0x290] sm:$0xff]
  %v108 = vld [vmem:[%s0 + $0x298] sm:$0xff]
  %v109 = vld [vmem:[%s0 + $0x2a0] sm:$0xff]
  %v110 = vld [vmem:[%s0 + $0x2a8] sm:$0xff]
  %v111 = vld [vmem:[%s0 + $0x2b0] sm:$0xff]
  %v112 = vld [vmem:[%s0 + $0x2b8] sm:$0xff]
  %v113 = vld [vmem:[%s0 + $0x2c0] sm:$0xff]
  %v114 = vld [vmem:[%s0 + $0x2c8] sm:$0xff]
  %v115 = vld [vmem:[%s0 + $0x2d0] sm:$0xff]
  %v116 = vld [vmem:[%s0 + $0x2d8] sm:$0xff]
  %v117 = vld [vmem:[%s0 + $0x2e0] sm:$0xff]
  %v118 = vld [vmem:[%s0 + $0x2e8] sm:$0xff]
  %v119 = vld [vmem:[%s0 + $0x2f0] sm:$0xff]
  %v120 = vld [vmem:[%s0 + $0x2f8] sm:$0xff]
  %v121 = vld [vmem:[%s0 + $0x300] sm:$0xff]
  %v122 = vld [vmem:[%s0 + $0x308] sm:$0xff]
  %v123 = vld [vmem:[%s0 + $0x310] sm:$0xff]
  %v124 = vld [vmem:[%s0 + $0x318] sm:$0xff]
  %v125 = vld [vmem:[%s0 + $0x320] sm:$0xff]
  %v126 = vld [vmem:[%s0 + $0x328] sm:$0xff]
  %v127 = vld [vmem:[%s0 + $0x330] sm:$0xff]
  %v128 = vld [vmem:[%s0 + $0x338] sm:$0xff]
  %v129 = vld [vmem:[%s0 + $0x340] sm:$0xff]
  %v130 = vld [vmem:[%s0 + $0x348] sm:$0xff]
  %v131 = vld [vmem:[%s0 + $0x350] sm:$0xff]
  %v132 = vld [vmem:[%s0 + $0x358] sm:$0xff]
  %v133 = vld [vmem:[%s0 + $0x360] sm:$0xff]
  %v134 = vld [vmem:[%s0 + $0x368] sm:$0xff]
  %v135 = vld [vmem:[%s0 + $0x370] sm:$0xff]
  %v136 = vld [vmem:[%s0 + $0x378] sm:$0xff]
  %v137 = vld [vmem:[%s0 + $0x380] sm:$0xff]
  %v138 = vld [vmem:[%s0 + $0x388] sm:$0xff]
  %v139 = vld [vmem:[%s0 + $0x390] sm:$0xff]
  %v140 = vld [vmem:[%s0 + $0x398] sm:$0xff]
  %v141 = vld [vmem:[%s0 + $0x3a0] sm:$0xff]
  %v142 = vld [vmem:[%s0 + $0x3a8] sm:$0xff]
  %v143 = vld [vmem:[%s0 + $0x3b0] sm:$0xff]
  %v144 = vld [vmem:[%s0 + $0x3b8] sm:$0xff]
  %v145 = vld [vmem:[%s0 + $0x3c0] sm:$0xff]
  %v146 = vld [vmem:[%s0 + $0x3c8] sm:$0xff]
  %v147 = vld [vmem:[%s0 + $0x3d0] sm:$0xff]
  %v148 = vld [vmem:[%s0 + $0x3d8] sm:$0xff]
  %v149 = vld [vmem:[%s0 + $0x3e0] sm:$0xff]
  %v150 = vld [vmem:[%s0 + $0x3e8] sm:$0xff]
  %v151 = vld [vmem:[%s0 + $0x3f0] sm:$0xff]
  %v152 = vld [vmem:[%s0 + $0x3f8] sm:$0xff]
  %v153 = vld [vmem:[%s2] sm:$0xff]
  %v154 = vld [vmem:[%s2 + $0x8] sm:$0xff]
  %v155 = vld [vmem:[%s2 + $0x10] sm:$0xff]
  %v156 = vld [vmem:[%s2 + $0x18] sm:$0xff]
  %v157 = vld [vmem:[%s2 + $0x20] sm:$0xff]
  %v158 = vld [vmem:[%s2 + $0x28] sm:$0xff]
  %v159 = vld [vmem:[%s2 + $0x30] sm:$0xff]
  %v160 = vld [vmem:[%s2 + $0x38] sm:$0xff]
  %v161 = vld [vmem:[%s2 + $0x40] sm:$0xff]
  %v162 = vld [vmem:[%s2 + $0x48] sm:$0xff]
  %v163 = vld [vmem:[%s2 + $0x50] sm:$0xff]
  %v164 = vld [vmem:[%s2 + $0x58] sm:$0xff]
  %v165 = vld [vmem:[%s2 + $0x60] sm:$0xff]
  %v166 = vld [vmem:[%s2 + $0x68] sm:$0xff]
  %v167 = vld [vmem:[%s2 + $0x70] sm:$0xff]
  %v168 = vld [vmem:[%s2 + $0x78] sm:$0xff]
  %169 = vmatprep.subr.mxu0 0.0
  %170 = vmatpush1.msra.mxu0 %v168
  %171 = vmatprep.subr.mxu0 0.0
  %172 = vmatpush1.msra.mxu0 %v167
  %173 = vmatprep.subr.mxu0 0.0
  %174 = vmatpush1.msra.mxu0 %v166
  %175 = vmatprep.subr.mxu0 0.0
  %176 = vmatpush1.msra.mxu0 %v165
  %177 = vmatprep.subr.mxu0 0.0
  %178 = vmatpush1.msra.mxu0 %v164
  %179 = vmatprep.subr.mxu0 0.0
  %180 = vmatpush1.msra.mxu0 %v163
  %181 = vmatprep.subr.mxu0 0.0
  %182 = vmatpush1.msra.mxu0 %v162
  %183 = vmatprep.subr.mxu0 0.0
  %184 = vmatpush1.msra.mxu0 %v161
  %185 = vmatprep.subr.mxu0 0.0
  %186 = vmatpush1.msra.mxu0 %v160
  %187 = vmatprep.subr.mxu0 0.0
  %188 = vmatpush1.msra.mxu0 %v159
  %189 = vmatprep.subr.mxu0 0.0
  %190 = vmatpush1.msra.mxu0 %v158
  %191 = vmatprep.subr.mxu0 0.0
  %192 = vmatpush1.msra.mxu0 %v157
  %193 = vmatprep.subr.mxu0 0.0
  %194 = vmatpush1.msra.mxu0 %v156
  %195 = vmatprep.subr.mxu0 0.0
  %196 = vmatpush1.msra.mxu0 %v155
  %197 = vmatprep.subr.mxu0 0.0
  %198 = vmatpush1.msra.mxu0 %v154
  %199 = vmatprep.subr.mxu0 0.0
  %200 = vmatpush1.msra.mxu0 %v153
  %201 = vmatprep.subr.mxu0 0.0
  %202 = vmatpush2.msra.mxu0 0.0
  %203 = vmatprep.subr.mxu0 0.0
  %204 = vmatpush2.msra.mxu0 0.0
  %205 = vmatprep.subr.mxu0 0.0
  %206 = vmatpush2.msra.mxu0 0.0
  %207 = vmatprep.subr.mxu0 0.0
  %208 = vmatpush2.msra.mxu0 0.0
  %209 = vmatprep.subr.mxu0 0.0
  %210 = vmatpush2.msra.mxu0 0.0
  %211 = vmatprep.subr.mxu0 0.0
  %212 = vmatpush2.msra.mxu0 0.0
  %213 = vmatprep.subr.mxu0 0.0
  %214 = vmatpush2.msra.mxu0 0.0
  %215 = vmatprep.subr.mxu0 0.0
  %216 = vmatpush2.msra.mxu0 0.0
  %217 = vmatprep.subr.mxu0 0.0
  %218 = vmatpush2.msra.mxu0 0.0
  %219 = vmatprep.subr.mxu0 0.0
  %220 = vmatpush2.msra.mxu0 0.0
  %221 = vmatprep.subr.mxu0 0.0
  %222 = vmatpush2.msra.mxu0 0.0
  %223 = vmatprep.subr.mxu0 0.0
  %224 = vmatpush2.msra.mxu0 0.0
  %225 = vmatprep.subr.mxu0 0.0
  %226 = vmatpush2.msra.mxu0 0.0
  %227 = vmatprep.subr.mxu0 0.0
  %228 = vmatpush2.msra.mxu0 0.0
  %229 = vmatprep.subr.mxu0 0.0
  %230 = vmatpush2.msra.mxu0 0.0
  %231 = vmatprep.subr.mxu0 0.0
  %232 = vmatpush2.msra.mxu0 0.0
  %233 = vmatprep.mubr.f32.mxu0 0.0
  %234 = vmatmul.mubr.f32.gmra.mxu0 %v25
  %v235 = vpop.f32.mrf.mxu0
  %v236 = vadd.f32 0.0, %v235
  %v237 = vpop.f32.mrf.mxu0
  %238 = vmatprep.mubr.f32.mxu0 0.0
  %239 = vmatmul.mubr.f32.gmra.mxu0 %v26
  %v240 = vpop.f32.mrf.mxu0
  %v241 = vadd.f32 0.0, %v240
  %v242 = vpop.f32.mrf.mxu0
  %243 = vmatprep.mubr.f32.mxu0 0.0
  %244 = vmatmul.mubr.f32.gmra.mxu0 %v27
  %v245 = vpop.f32.mrf.mxu0
  %v246 = vadd.f32 0.0, %v245
  %v247 = vpop.f32.mrf.mxu0
  %248 = vmatprep.mubr.f32.mxu0 0.0
  %249 = vmatmul.mubr.f32.gmra.mxu0 %v28
  %v250 = vpop.f32.mrf.mxu0
  %v251 = vadd.f32 0.0, %v250
  %v252 = vpop.f32.mrf.mxu0
  %253 = vmatprep.mubr.f32.mxu0 0.0
  %254 = vmatmul.mubr.f32.gmra.mxu0 %v29
  %v255 = vpop.f32.mrf.mxu0
  %v256 = vadd.f32 0.0, %v255
  %v257 = vpop.f32.mrf.mxu0
  %258 = vmatprep.mubr.f32.mxu0 0.0
  %259 = vmatmul.mubr.f32.gmra.mxu0 %v30
  %v260 = vpop.f32.mrf.mxu0
  %v261 = vadd.f32 0.0, %v260
  %v262 = vpop.f32.mrf.mxu0
  %263 = vmatprep.mubr.f32.mxu0 0.0
  %264 = vmatmul.mubr.f32.gmra.mxu0 %v31
  %v265 = vpop.f32.mrf.mxu0
  %v266 = vadd.f32 0.0, %v265
  %v267 = vpop.f32.mrf.mxu0
  %268 = vmatprep.mubr.f32.mxu0 0.0
  %269 = vmatmul.mubr.f32.gmra.mxu0 %v32
  %v270 = vpop.f32.mrf.mxu0
  %v271 = vadd.f32 0.0, %v270
  %v272 = vpop.f32.mrf.mxu0
  %273 = vmatprep.mubr.f32.mxu0 0.0
  %274 = vmatmul.mubr.f32.gmra.mxu0 %v33
  %v275 = vpop.f32.mrf.mxu0
  %v276 = vadd.f32 0.0, %v275
  %v277 = vpop.f32.mrf.mxu0
  %278 = vmatprep.mubr.f32.mxu0 0.0
  %279 = vmatmul.mubr.f32.gmra.mxu0 %v34
  %v280 = vpop.f32.mrf.mxu0
  %v281 = vadd.f32 0.0, %v280
  %v282 = vpop.f32.mrf.mxu0
  %283 = vmatprep.mubr.f32.mxu0 0.0
  %284 = vmatmul.mubr.f32.gmra.mxu0 %v35
  %v285 = vpop.f32.mrf.mxu0
  %v286 = vadd.f32 0.0, %v285
  %v287 = vpop.f32.mrf.mxu0
  %288 = vmatprep.mubr.f32.mxu0 0.0
  %289 = vmatmul.mubr.f32.gmra.mxu0 %v36
  %v290 = vpop.f32.mrf.mxu0
  %v291 = vadd.f32 0.0, %v290
  %v292 = vpop.f32.mrf.mxu0
  %293 = vmatprep.mubr.f32.mxu0 0.0
  %294 = vmatmul.mubr.f32.gmra.mxu0 %v37
  %v295 = vpop.f32.mrf.mxu0
  %v296 = vadd.f32 0.0, %v295
  %v297 = vpop.f32.mrf.mxu0
  %298 = vmatprep.mubr.f32.mxu0 0.0
  %299 = vmatmul.mubr.f32.gmra.mxu0 %v38
  %v300 = vpop.f32.mrf.mxu0
  %v301 = vadd.f32 0.0, %v300
  %v302 = vpop.f32.mrf.mxu0
  %303 = vmatprep.mubr.f32.mxu0 0.0
  %304 = vmatmul.mubr.f32.gmra.mxu0 %v39
  %v305 = vpop.f32.mrf.mxu0
  %v306 = vadd.f32 0.0, %v305
  %v307 = vpop.f32.mrf.mxu0
  %308 = vmatprep.mubr.f32.mxu0 0.0
  %309 = vmatmul.mubr.f32.gmra.mxu0 %v40
  %v310 = vpop.f32.mrf.mxu0
  %v311 = vadd.f32 0.0, %v310
  %v312 = vpop.f32.mrf.mxu0
  %313 = vmatprep.mubr.f32.mxu0 0.0
  %314 = vmatmul.mubr.f32.gmra.mxu0 %v41
  %v315 = vpop.f32.mrf.mxu0
  %v316 = vadd.f32 0.0, %v315
  %v317 = vpop.f32.mrf.mxu0
  %318 = vmatprep.mubr.f32.mxu0 0.0
  %319 = vmatmul.mubr.f32.gmra.mxu0 %v42
  %v320 = vpop.f32.mrf.mxu0
  %v321 = vadd.f32 0.0, %v320
  %v322 = vpop.f32.mrf.mxu0
  %323 = vmatprep.mubr.f32.mxu0 0.0
  %324 = vmatmul.mubr.f32.gmra.mxu0 %v43
  %v325 = vpop.f32.mrf.mxu0
  %v326 = vadd.f32 0.0, %v325
  %v327 = vpop.f32.mrf.mxu0
  %328 = vmatprep.mubr.f32.mxu0 0.0
  %329 = vmatmul.mubr.f32.gmra.mxu0 %v44
  %v330 = vpop.f32.mrf.mxu0
  %v331 = vadd.f32 0.0, %v330
  %v332 = vpop.f32.mrf.mxu0
  %333 = vmatprep.mubr.f32.mxu0 0.0
  %334 = vmatmul.mubr.f32.gmra.mxu0 %v45
  %v335 = vpop.f32.mrf.mxu0
  %v336 = vadd.f32 0.0, %v335
  %v337 = vpop.f32.mrf.mxu0
  %338 = vmatprep.mubr.f32.mxu0 0.0
  %339 = vmatmul.mubr.f32.gmra.mxu0 %v46
  %v340 = vpop.f32.mrf.mxu0
  %v341 = vadd.f32 0.0, %v340
  %v342 = vpop.f32.mrf.mxu0
  %343 = vmatprep.mubr.f32.mxu0 0.0
  %344 = vmatmul.mubr.f32.gmra.mxu0 %v47
  %v345 = vpop.f32.mrf.mxu0
  %v346 = vadd.f32 0.0, %v345
  %v347 = vpop.f32.mrf.mxu0
  %348 = vmatprep.mubr.f32.mxu0 0.0
  %349 = vmatmul.mubr.f32.gmra.mxu0 %v48
  %v350 = vpop.f32.mrf.mxu0
  %v351 = vadd.f32 0.0, %v350
  %v352 = vpop.f32.mrf.mxu0
  %353 = vmatprep.mubr.f32.mxu0 0.0
  %354 = vmatmul.mubr.f32.gmra.mxu0 %v49
  %v355 = vpop.f32.mrf.mxu0
  %v356 = vadd.f32 0.0, %v355
  %v357 = vpop.f32.mrf.mxu0
  %358 = vmatprep.mubr.f32.mxu0 0.0
  %359 = vmatmul.mubr.f32.gmra.mxu0 %v50
  %v360 = vpop.f32.mrf.mxu0
  %v361 = vadd.f32 0.0, %v360
  %v362 = vpop.f32.mrf.mxu0
  %363 = vmatprep.mubr.f32.mxu0 0.0
  %364 = vmatmul.mubr.f32.gmra.mxu0 %v51
  %v365 = vpop.f32.mrf.mxu0
  %v366 = vadd.f32 0.0, %v365
  %v367 = vpop.f32.mrf.mxu0
  %368 = vmatprep.mubr.f32.mxu0 0.0
  %369 = vmatmul.mubr.f32.gmra.mxu0 %v52
  %v370 = vpop.f32.mrf.mxu0
  %v371 = vadd.f32 0.0, %v370
  %v372 = vpop.f32.mrf.mxu0
  %373 = vmatprep.mubr.f32.mxu0 0.0
  %374 = vmatmul.mubr.f32.gmra.mxu0 %v53
  %v375 = vpop.f32.mrf.mxu0
  %v376 = vadd.f32 0.0, %v375
  %v377 = vpop.f32.mrf.mxu0
  %378 = vmatprep.mubr.f32.mxu0 0.0
  %379 = vmatmul.mubr.f32.gmra.mxu0 %v54
  %v380 = vpop.f32.mrf.mxu0
  %v381 = vadd.f32 0.0, %v380
  %v382 = vpop.f32.mrf.mxu0
  %383 = vmatprep.mubr.f32.mxu0 0.0
  %384 = vmatmul.mubr.f32.gmra.mxu0 %v55
  %v385 = vpop.f32.mrf.mxu0
  %v386 = vadd.f32 0.0, %v385
  %v387 = vpop.f32.mrf.mxu0
  %388 = vmatprep.mubr.f32.mxu0 0.0
  %389 = vmatmul.mubr.f32.gmra.mxu0 %v56
  %v390 = vpop.f32.mrf.mxu0
  %v391 = vadd.f32 0.0, %v390
  %v392 = vpop.f32.mrf.mxu0
  %393 = vmatprep.mubr.f32.mxu0 0.0
  %394 = vmatmul.mubr.f32.gmra.mxu0 %v57
  %v395 = vpop.f32.mrf.mxu0
  %v396 = vadd.f32 0.0, %v395
  %v397 = vpop.f32.mrf.mxu0
  %398 = vmatprep.mubr.f32.mxu0 0.0
  %399 = vmatmul.mubr.f32.gmra.mxu0 %v58
  %v400 = vpop.f32.mrf.mxu0
  %v401 = vadd.f32 0.0, %v400
  %v402 = vpop.f32.mrf.mxu0
  %403 = vmatprep.mubr.f32.mxu0 0.0
  %404 = vmatmul.mubr.f32.gmra.mxu0 %v59
  %v405 = vpop.f32.mrf.mxu0
  %v406 = vadd.f32 0.0, %v405
  %v407 = vpop.f32.mrf.mxu0
  %408 = vmatprep.mubr.f32.mxu0 0.0
  %409 = vmatmul.mubr.f32.gmra.mxu0 %v60
  %v410 = vpop.f32.mrf.mxu0
  %v411 = vadd.f32 0.0, %v410
  %v412 = vpop.f32.mrf.mxu0
  %413 = vmatprep.mubr.f32.mxu0 0.0
  %414 = vmatmul.mubr.f32.gmra.mxu0 %v61
  %v415 = vpop.f32.mrf.mxu0
  %v416 = vadd.f32 0.0, %v415
  %v417 = vpop.f32.mrf.mxu0
  %418 = vmatprep.mubr.f32.mxu0 0.0
  %419 = vmatmul.mubr.f32.gmra.mxu0 %v62
  %v420 = vpop.f32.mrf.mxu0
  %v421 = vadd.f32 0.0, %v420
  %v422 = vpop.f32.mrf.mxu0
  %423 = vmatprep.mubr.f32.mxu0 0.0
  %424 = vmatmul.mubr.f32.gmra.mxu0 %v63
  %v425 = vpop.f32.mrf.mxu0
  %v426 = vadd.f32 0.0, %v425
  %v427 = vpop.f32.mrf.mxu0
  %428 = vmatprep.mubr.f32.mxu0 0.0
  %429 = vmatmul.mubr.f32.gmra.mxu0 %v64
  %v430 = vpop.f32.mrf.mxu0
  %v431 = vadd.f32 0.0, %v430
  %v432 = vpop.f32.mrf.mxu0
  %433 = vmatprep.mubr.f32.mxu0 0.0
  %434 = vmatmul.mubr.f32.gmra.mxu0 %v65
  %v435 = vpop.f32.mrf.mxu0
  %v436 = vadd.f32 0.0, %v435
  %v437 = vpop.f32.mrf.mxu0
  %438 = vmatprep.mubr.f32.mxu0 0.0
  %439 = vmatmul.mubr.f32.gmra.mxu0 %v66
  %v440 = vpop.f32.mrf.mxu0
  %v441 = vadd.f32 0.0, %v440
  %v442 = vpop.f32.mrf.mxu0
  %443 = vmatprep.mubr.f32.mxu0 0.0
  %444 = vmatmul.mubr.f32.gmra.mxu0 %v67
  %v445 = vpop.f32.mrf.mxu0
  %v446 = vadd.f32 0.0, %v445
  %v447 = vpop.f32.mrf.mxu0
  %448 = vmatprep.mubr.f32.mxu0 0.0
  %449 = vmatmul.mubr.f32.gmra.mxu0 %v68
  %v450 = vpop.f32.mrf.mxu0
  %v451 = vadd.f32 0.0, %v450
  %v452 = vpop.f32.mrf.mxu0
  %453 = vmatprep.mubr.f32.mxu0 0.0
  %454 = vmatmul.mubr.f32.gmra.mxu0 %v69
  %v455 = vpop.f32.mrf.mxu0
  %v456 = vadd.f32 0.0, %v455
  %v457 = vpop.f32.mrf.mxu0
  %458 = vmatprep.mubr.f32.mxu0 0.0
  %459 = vmatmul.mubr.f32.gmra.mxu0 %v70
  %v460 = vpop.f32.mrf.mxu0
  %v461 = vadd.f32 0.0, %v460
  %v462 = vpop.f32.mrf.mxu0
  %463 = vmatprep.mubr.f32.mxu0 0.0
  %464 = vmatmul.mubr.f32.gmra.mxu0 %v71
  %v465 = vpop.f32.mrf.mxu0
  %v466 = vadd.f32 0.0, %v465
  %v467 = vpop.f32.mrf.mxu0
  %468 = vmatprep.mubr.f32.mxu0 0.0
  %469 = vmatmul.mubr.f32.gmra.mxu0 %v72
  %v470 = vpop.f32.mrf.mxu0
  %v471 = vadd.f32 0.0, %v470
  %v472 = vpop.f32.mrf.mxu0
  %473 = vmatprep.mubr.f32.mxu0 0.0
  %474 = vmatmul.mubr.f32.gmra.mxu0 %v73
  %v475 = vpop.f32.mrf.mxu0
  %v476 = vadd.f32 0.0, %v475
  %v477 = vpop.f32.mrf.mxu0
  %478 = vmatprep.mubr.f32.mxu0 0.0
  %479 = vmatmul.mubr.f32.gmra.mxu0 %v74
  %v480 = vpop.f32.mrf.mxu0
  %v481 = vadd.f32 0.0, %v480
  %v482 = vpop.f32.mrf.mxu0
  %483 = vmatprep.mubr.f32.mxu0 0.0
  %484 = vmatmul.mubr.f32.gmra.mxu0 %v75
  %v485 = vpop.f32.mrf.mxu0
  %v486 = vadd.f32 0.0, %v485
  %v487 = vpop.f32.mrf.mxu0
  %488 = vmatprep.mubr.f32.mxu0 0.0
  %489 = vmatmul.mubr.f32.gmra.mxu0 %v76
  %v490 = vpop.f32.mrf.mxu0
  %v491 = vadd.f32 0.0, %v490
  %v492 = vpop.f32.mrf.mxu0
  %493 = vmatprep.mubr.f32.mxu0 0.0
  %494 = vmatmul.mubr.f32.gmra.mxu0 %v77
  %v495 = vpop.f32.mrf.mxu0
  %v496 = vadd.f32 0.0, %v495
  %v497 = vpop.f32.mrf.mxu0
  %498 = vmatprep.mubr.f32.mxu0 0.0
  %499 = vmatmul.mubr.f32.gmra.mxu0 %v78
  %v500 = vpop.f32.mrf.mxu0
  %v501 = vadd.f32 0.0, %v500
  %v502 = vpop.f32.mrf.mxu0
  %503 = vmatprep.mubr.f32.mxu0 0.0
  %504 = vmatmul.mubr.f32.gmra.mxu0 %v79
  %v505 = vpop.f32.mrf.mxu0
  %v506 = vadd.f32 0.0, %v505
  %v507 = vpop.f32.mrf.mxu0
  %508 = vmatprep.mubr.f32.mxu0 0.0
  %509 = vmatmul.mubr.f32.gmra.mxu0 %v80
  %v510 = vpop.f32.mrf.mxu0
  %v511 = vadd.f32 0.0, %v510
  %v512 = vpop.f32.mrf.mxu0
  %513 = vmatprep.mubr.f32.mxu0 0.0
  %514 = vmatmul.mubr.f32.gmra.mxu0 %v81
  %v515 = vpop.f32.mrf.mxu0
  %v516 = vadd.f32 0.0, %v515
  %v517 = vpop.f32.mrf.mxu0
  %518 = vmatprep.mubr.f32.mxu0 0.0
  %519 = vmatmul.mubr.f32.gmra.mxu0 %v82
  %v520 = vpop.f32.mrf.mxu0
  %v521 = vadd.f32 0.0, %v520
  %v522 = vpop.f32.mrf.mxu0
  %523 = vmatprep.mubr.f32.mxu0 0.0
  %524 = vmatmul.mubr.f32.gmra.mxu0 %v83
  %v525 = vpop.f32.mrf.mxu0
  %v526 = vadd.f32 0.0, %v525
  %v527 = vpop.f32.mrf.mxu0
  %528 = vmatprep.mubr.f32.mxu0 0.0
  %529 = vmatmul.mubr.f32.gmra.mxu0 %v84
  %v530 = vpop.f32.mrf.mxu0
  %v531 = vadd.f32 0.0, %v530
  %v532 = vpop.f32.mrf.mxu0
  %533 = vmatprep.mubr.f32.mxu0 0.0
  %534 = vmatmul.mubr.f32.gmra.mxu0 %v85
  %v535 = vpop.f32.mrf.mxu0
  %v536 = vadd.f32 0.0, %v535
  %v537 = vpop.f32.mrf.mxu0
  %538 = vmatprep.mubr.f32.mxu0 0.0
  %539 = vmatmul.mubr.f32.gmra.mxu0 %v86
  %v540 = vpop.f32.mrf.mxu0
  %v541 = vadd.f32 0.0, %v540
  %v542 = vpop.f32.mrf.mxu0
  %543 = vmatprep.mubr.f32.mxu0 0.0
  %544 = vmatmul.mubr.f32.gmra.mxu0 %v87
  %v545 = vpop.f32.mrf.mxu0
  %v546 = vadd.f32 0.0, %v545
  %v547 = vpop.f32.mrf.mxu0
  %548 = vmatprep.mubr.f32.mxu0 0.0
  %549 = vmatmul.mubr.f32.gmra.mxu0 %v88
  %v550 = vpop.f32.mrf.mxu0
  %v551 = vadd.f32 0.0, %v550
  %v552 = vpop.f32.mrf.mxu0
  %553 = vmatprep.mubr.f32.mxu0 0.0
  %554 = vmatmul.mubr.f32.gmra.mxu0 %v89
  %v555 = vpop.f32.mrf.mxu0
  %v556 = vadd.f32 0.0, %v555
  %v557 = vpop.f32.mrf.mxu0
  %558 = vmatprep.mubr.f32.mxu0 0.0
  %559 = vmatmul.mubr.f32.gmra.mxu0 %v90
  %v560 = vpop.f32.mrf.mxu0
  %v561 = vadd.f32 0.0, %v560
  %v562 = vpop.f32.mrf.mxu0
  %563 = vmatprep.mubr.f32.mxu0 0.0
  %564 = vmatmul.mubr.f32.gmra.mxu0 %v91
  %v565 = vpop.f32.mrf.mxu0
  %v566 = vadd.f32 0.0, %v565
  %v567 = vpop.f32.mrf.mxu0
  %568 = vmatprep.mubr.f32.mxu0 0.0
  %569 = vmatmul.mubr.f32.gmra.mxu0 %v92
  %v570 = vpop.f32.mrf.mxu0
  %v571 = vadd.f32 0.0, %v570
  %v572 = vpop.f32.mrf.mxu0
  %573 = vmatprep.mubr.f32.mxu0 0.0
  %574 = vmatmul.mubr.f32.gmra.mxu0 %v93
  %v575 = vpop.f32.mrf.mxu0
  %v576 = vadd.f32 0.0, %v575
  %v577 = vpop.f32.mrf.mxu0
  %578 = vmatprep.mubr.f32.mxu0 0.0
  %579 = vmatmul.mubr.f32.gmra.mxu0 %v94
  %v580 = vpop.f32.mrf.mxu0
  %v581 = vadd.f32 0.0, %v580
  %v582 = vpop.f32.mrf.mxu0
  %583 = vmatprep.mubr.f32.mxu0 0.0
  %584 = vmatmul.mubr.f32.gmra.mxu0 %v95
  %v585 = vpop.f32.mrf.mxu0
  %v586 = vadd.f32 0.0, %v585
  %v587 = vpop.f32.mrf.mxu0
  %588 = vmatprep.mubr.f32.mxu0 0.0
  %589 = vmatmul.mubr.f32.gmra.mxu0 %v96
  %v590 = vpop.f32.mrf.mxu0
  %v591 = vadd.f32 0.0, %v590
  %v592 = vpop.f32.mrf.mxu0
  %593 = vmatprep.mubr.f32.mxu0 0.0
  %594 = vmatmul.mubr.f32.gmra.mxu0 %v97
  %v595 = vpop.f32.mrf.mxu0
  %v596 = vadd.f32 0.0, %v595
  %v597 = vpop.f32.mrf.mxu0
  %598 = vmatprep.mubr.f32.mxu0 0.0
  %599 = vmatmul.mubr.f32.gmra.mxu0 %v98
  %v600 = vpop.f32.mrf.mxu0
  %v601 = vadd.f32 0.0, %v600
  %v602 = vpop.f32.mrf.mxu0
  %603 = vmatprep.mubr.f32.mxu0 0.0
  %604 = vmatmul.mubr.f32.gmra.mxu0 %v99
  %v605 = vpop.f32.mrf.mxu0
  %v606 = vadd.f32 0.0, %v605
  %v607 = vpop.f32.mrf.mxu0
  %608 = vmatprep.mubr.f32.mxu0 0.0
  %609 = vmatmul.mubr.f32.gmra.mxu0 %v100
  %v610 = vpop.f32.mrf.mxu0
  %v611 = vadd.f32 0.0, %v610
  %v612 = vpop.f32.mrf.mxu0
  %613 = vmatprep.mubr.f32.mxu0 0.0
  %614 = vmatmul.mubr.f32.gmra.mxu0 %v101
  %v615 = vpop.f32.mrf.mxu0
  %v616 = vadd.f32 0.0, %v615
  %v617 = vpop.f32.mrf.mxu0
  %618 = vmatprep.mubr.f32.mxu0 0.0
  %619 = vmatmul.mubr.f32.gmra.mxu0 %v102
  %v620 = vpop.f32.mrf.mxu0
  %v621 = vadd.f32 0.0, %v620
  %v622 = vpop.f32.mrf.mxu0
  %623 = vmatprep.mubr.f32.mxu0 0.0
  %624 = vmatmul.mubr.f32.gmra.mxu0 %v103
  %v625 = vpop.f32.mrf.mxu0
  %v626 = vadd.f32 0.0, %v625
  %v627 = vpop.f32.mrf.mxu0
  %628 = vmatprep.mubr.f32.mxu0 0.0
  %629 = vmatmul.mubr.f32.gmra.mxu0 %v104
  %v630 = vpop.f32.mrf.mxu0
  %v631 = vadd.f32 0.0, %v630
  %v632 = vpop.f32.mrf.mxu0
  %633 = vmatprep.mubr.f32.mxu0 0.0
  %634 = vmatmul.mubr.f32.gmra.mxu0 %v105
  %v635 = vpop.f32.mrf.mxu0
  %v636 = vadd.f32 0.0, %v635
  %v637 = vpop.f32.mrf.mxu0
  %638 = vmatprep.mubr.f32.mxu0 0.0
  %639 = vmatmul.mubr.f32.gmra.mxu0 %v106
  %v640 = vpop.f32.mrf.mxu0
  %v641 = vadd.f32 0.0, %v640
  %v642 = vpop.f32.mrf.mxu0
  %643 = vmatprep.mubr.f32.mxu0 0.0
  %644 = vmatmul.mubr.f32.gmra.mxu0 %v107
  %v645 = vpop.f32.mrf.mxu0
  %v646 = vadd.f32 0.0, %v645
  %v647 = vpop.f32.mrf.mxu0
  %648 = vmatprep.mubr.f32.mxu0 0.0
  %649 = vmatmul.mubr.f32.gmra.mxu0 %v108
  %v650 = vpop.f32.mrf.mxu0
  %v651 = vadd.f32 0.0, %v650
  %v652 = vpop.f32.mrf.mxu0
  %653 = vmatprep.mubr.f32.mxu0 0.0
  %654 = vmatmul.mubr.f32.gmra.mxu0 %v109
  %v655 = vpop.f32.mrf.mxu0
  %v656 = vadd.f32 0.0, %v655
  %v657 = vpop.f32.mrf.mxu0
  %658 = vmatprep.mubr.f32.mxu0 0.0
  %659 = vmatmul.mubr.f32.gmra.mxu0 %v110
  %v660 = vpop.f32.mrf.mxu0
  %v661 = vadd.f32 0.0, %v660
  %v662 = vpop.f32.mrf.mxu0
  %663 = vmatprep.mubr.f32.mxu0 0.0
  %664 = vmatmul.mubr.f32.gmra.mxu0 %v111
  %v665 = vpop.f32.mrf.mxu0
  %v666 = vadd.f32 0.0, %v665
  %v667 = vpop.f32.mrf.mxu0
  %668 = vmatprep.mubr.f32.mxu0 0.0
  %669 = vmatmul.mubr.f32.gmra.mxu0 %v112
  %v670 = vpop.f32.mrf.mxu0
  %v671 = vadd.f32 0.0, %v670
  %v672 = vpop.f32.mrf.mxu0
  %673 = vmatprep.mubr.f32.mxu0 0.0
  %674 = vmatmul.mubr.f32.gmra.mxu0 %v113
  %v675 = vpop.f32.mrf.mxu0
  %v676 = vadd.f32 0.0, %v675
  %v677 = vpop.f32.mrf.mxu0
  %678 = vmatprep.mubr.f32.mxu0 0.0
  %679 = vmatmul.mubr.f32.gmra.mxu0 %v114
  %v680 = vpop.f32.mrf.mxu0
  %v681 = vadd.f32 0.0, %v680
  %v682 = vpop.f32.mrf.mxu0
  %683 = vmatprep.mubr.f32.mxu0 0.0
  %684 = vmatmul.mubr.f32.gmra.mxu0 %v115
  %v685 = vpop.f32.mrf.mxu0
  %v686 = vadd.f32 0.0, %v685
  %v687 = vpop.f32.mrf.mxu0
  %688 = vmatprep.mubr.f32.mxu0 0.0
  %689 = vmatmul.mubr.f32.gmra.mxu0 %v116
  %v690 = vpop.f32.mrf.mxu0
  %v691 = vadd.f32 0.0, %v690
  %v692 = vpop.f32.mrf.mxu0
  %693 = vmatprep.mubr.f32.mxu0 0.0
  %694 = vmatmul.mubr.f32.gmra.mxu0 %v117
  %v695 = vpop.f32.mrf.mxu0
  %v696 = vadd.f32 0.0, %v695
  %v697 = vpop.f32.mrf.mxu0
  %698 = vmatprep.mubr.f32.mxu0 0.0
  %699 = vmatmul.mubr.f32.gmra.mxu0 %v118
  %v700 = vpop.f32.mrf.mxu0
  %v701 = vadd.f32 0.0, %v700
  %v702 = vpop.f32.mrf.mxu0
  %703 = vmatprep.mubr.f32.mxu0 0.0
  %704 = vmatmul.mubr.f32.gmra.mxu0 %v119
  %v705 = vpop.f32.mrf.mxu0
  %v706 = vadd.f32 0.0, %v705
  %v707 = vpop.f32.mrf.mxu0
  %708 = vmatprep.mubr.f32.mxu0 0.0
  %709 = vmatmul.mubr.f32.gmra.mxu0 %v120
  %v710 = vpop.f32.mrf.mxu0
  %v711 = vadd.f32 0.0, %v710
  %v712 = vpop.f32.mrf.mxu0
  %713 = vmatprep.mubr.f32.mxu0 0.0
  %714 = vmatmul.mubr.f32.gmra.mxu0 %v121
  %v715 = vpop.f32.mrf.mxu0
  %v716 = vadd.f32 0.0, %v715
  %v717 = vpop.f32.mrf.mxu0
  %718 = vmatprep.mubr.f32.mxu0 0.0
  %719 = vmatmul.mubr.f32.gmra.mxu0 %v122
  %v720 = vpop.f32.mrf.mxu0
  %v721 = vadd.f32 0.0, %v720
  %v722 = vpop.f32.mrf.mxu0
  %723 = vmatprep.mubr.f32.mxu0 0.0
  %724 = vmatmul.mubr.f32.gmra.mxu0 %v123
  %v725 = vpop.f32.mrf.mxu0
  %v726 = vadd.f32 0.0, %v725
  %v727 = vpop.f32.mrf.mxu0
  %728 = vmatprep.mubr.f32.mxu0 0.0
  %729 = vmatmul.mubr.f32.gmra.mxu0 %v124
  %v730 = vpop.f32.mrf.mxu0
  %v731 = vadd.f32 0.0, %v730
  %v732 = vpop.f32.mrf.mxu0
  %733 = vmatprep.mubr.f32.mxu0 0.0
  %734 = vmatmul.mubr.f32.gmra.mxu0 %v125
  %v735 = vpop.f32.mrf.mxu0
  %v736 = vadd.f32 0.0, %v735
  %v737 = vpop.f32.mrf.mxu0
  %738 = vmatprep.mubr.f32.mxu0 0.0
  %739 = vmatmul.mubr.f32.gmra.mxu0 %v126
  %v740 = vpop.f32.mrf.mxu0
  %v741 = vadd.f32 0.0, %v740
  %v742 = vpop.f32.mrf.mxu0
  %743 = vmatprep.mubr.f32.mxu0 0.0
  %744 = vmatmul.mubr.f32.gmra.mxu0 %v127
  %v745 = vpop.f32.mrf.mxu0
  %v746 = vadd.f32 0.0, %v745
  %v747 = vpop.f32.mrf.mxu0
  %748 = vmatprep.mubr.f32.mxu0 0.0
  %749 = vmatmul.mubr.f32.gmra.mxu0 %v128
  %v750 = vpop.f32.mrf.mxu0
  %v751 = vadd.f32 0.0, %v750
  %v752 = vpop.f32.mrf.mxu0
  %753 = vmatprep.mubr.f32.mxu0 0.0
  %754 = vmatmul.mubr.f32.gmra.mxu0 %v129
  %v755 = vpop.f32.mrf.mxu0
  %v756 = vadd.f32 0.0, %v755
  %v757 = vpop.f32.mrf.mxu0
  %758 = vmatprep.mubr.f32.mxu0 0.0
  %759 = vmatmul.mubr.f32.gmra.mxu0 %v130
  %v760 = vpop.f32.mrf.mxu0
  %v761 = vadd.f32 0.0, %v760
  %v762 = vpop.f32.mrf.mxu0
  %763 = vmatprep.mubr.f32.mxu0 0.0
  %764 = vmatmul.mubr.f32.gmra.mxu0 %v131
  %v765 = vpop.f32.mrf.mxu0
  %v766 = vadd.f32 0.0, %v765
  %v767 = vpop.f32.mrf.mxu0
  %768 = vmatprep.mubr.f32.mxu0 0.0
  %769 = vmatmul.mubr.f32.gmra.mxu0 %v132
  %v770 = vpop.f32.mrf.mxu0
  %v771 = vadd.f32 0.0, %v770
  %v772 = vpop.f32.mrf.mxu0
  %773 = vmatprep.mubr.f32.mxu0 0.0
  %774 = vmatmul.mubr.f32.gmra.mxu0 %v133
  %v775 = vpop.f32.mrf.mxu0
  %v776 = vadd.f32 0.0, %v775
  %v777 = vpop.f32.mrf.mxu0
  %778 = vmatprep.mubr.f32.mxu0 0.0
  %779 = vmatmul.mubr.f32.gmra.mxu0 %v134
  %v780 = vpop.f32.mrf.mxu0
  %v781 = vadd.f32 0.0, %v780
  %v782 = vpop.f32.mrf.mxu0
  %783 = vmatprep.mubr.f32.mxu0 0.0
  %784 = vmatmul.mubr.f32.gmra.mxu0 %v135
  %v785 = vpop.f32.mrf.mxu0
  %v786 = vadd.f32 0.0, %v785
  %v787 = vpop.f32.mrf.mxu0
  %788 = vmatprep.mubr.f32.mxu0 0.0
  %789 = vmatmul.mubr.f32.gmra.mxu0 %v136
  %v790 = vpop.f32.mrf.mxu0
  %v791 = vadd.f32 0.0, %v790
  %v792 = vpop.f32.mrf.mxu0
  %793 = vmatprep.mubr.f32.mxu0 0.0
  %794 = vmatmul.mubr.f32.gmra.mxu0 %v137
  %v795 = vpop.f32.mrf.mxu0
  %v796 = vadd.f32 0.0, %v795
  %v797 = vpop.f32.mrf.mxu0
  %798 = vmatprep.mubr.f32.mxu0 0.0
  %799 = vmatmul.mubr.f32.gmra.mxu0 %v138
  %v800 = vpop.f32.mrf.mxu0
  %v801 = vadd.f32 0.0, %v800
  %v802 = vpop.f32.mrf.mxu0
  %803 = vmatprep.mubr.f32.mxu0 0.0
  %804 = vmatmul.mubr.f32.gmra.mxu0 %v139
  %v805 = vpop.f32.mrf.mxu0
  %v806 = vadd.f32 0.0, %v805
  %v807 = vpop.f32.mrf.mxu0
  %808 = vmatprep.mubr.f32.mxu0 0.0
  %809 = vmatmul.mubr.f32.gmra.mxu0 %v140
  %v810 = vpop.f32.mrf.mxu0
  %v811 = vadd.f32 0.0, %v810
  %v812 = vpop.f32.mrf.mxu0
  %813 = vmatprep.mubr.f32.mxu0 0.0
  %814 = vmatmul.mubr.f32.gmra.mxu0 %v141
  %v815 = vpop.f32.mrf.mxu0
  %v816 = vadd.f32 0.0, %v815
  %v817 = vpop.f32.mrf.mxu0
  %818 = vmatprep.mubr.f32.mxu0 0.0
  %819 = vmatmul.mubr.f32.gmra.mxu0 %v142
  %v820 = vpop.f32.mrf.mxu0
  %v821 = vadd.f32 0.0, %v820
  %v822 = vpop.f32.mrf.mxu0
  %823 = vmatprep.mubr.f32.mxu0 0.0
  %824 = vmatmul.mubr.f32.gmra.mxu0 %v143
  %v825 = vpop.f32.mrf.mxu0
  %v826 = vadd.f32 0.0, %v825
  %v827 = vpop.f32.mrf.mxu0
  %828 = vmatprep.mubr.f32.mxu0 0.0
  %829 = vmatmul.mubr.f32.gmra.mxu0 %v144
  %v830 = vpop.f32.mrf.mxu0
  %v831 = vadd.f32 0.0, %v830
  %v832 = vpop.f32.mrf.mxu0
  %833 = vmatprep.mubr.f32.mxu0 0.0
  %834 = vmatmul.mubr.f32.gmra.mxu0 %v145
  %v835 = vpop.f32.mrf.mxu0
  %v836 = vadd.f32 0.0, %v835
  %v837 = vpop.f32.mrf.mxu0
  %838 = vmatprep.mubr.f32.mxu0 0.0
  %839 = vmatmul.mubr.f32.gmra.mxu0 %v146
  %v840 = vpop.f32.mrf.mxu0
  %v841 = vadd.f32 0.0, %v840
  %v842 = vpop.f32.mrf.mxu0
  %843 = vmatprep.mubr.f32.mxu0 0.0
  %844 = vmatmul.mubr.f32.gmra.mxu0 %v147
  %v845 = vpop.f32.mrf.mxu0
  %v846 = vadd.f32 0.0, %v845
  %v847 = vpop.f32.mrf.mxu0
  %848 = vmatprep.mubr.f32.mxu0 0.0
  %849 = vmatmul.mubr.f32.gmra.mxu0 %v148
  %v850 = vpop.f32.mrf.mxu0
  %v851 = vadd.f32 0.0, %v850
  %v852 = vpop.f32.mrf.mxu0
  %853 = vmatprep.mubr.f32.mxu0 0.0
  %854 = vmatmul.mubr.f32.gmra.mxu0 %v149
  %v855 = vpop.f32.mrf.mxu0
  %v856 = vadd.f32 0.0, %v855
  %v857 = vpop.f32.mrf.mxu0
  %858 = vmatprep.mubr.f32.mxu0 0.0
  %859 = vmatmul.mubr.f32.gmra.mxu0 %v150
  %v860 = vpop.f32.mrf.mxu0
  %v861 = vadd.f32 0.0, %v860
  %v862 = vpop.f32.mrf.mxu0
  %863 = vmatprep.mubr.f32.mxu0 0.0
  %864 = vmatmul.mubr.f32.gmra.mxu0 %v151
  %v865 = vpop.f32.mrf.mxu0
  %v866 = vadd.f32 0.0, %v865
  %v867 = vpop.f32.mrf.mxu0
  %868 = vmatprep.mubr.f32.mxu0 0.0
  %869 = vmatmul.mubr.f32.gmra.mxu0 %v152
  %v870 = vpop.f32.mrf.mxu0
  %v871 = vadd.f32 0.0, %v870
  %v872 = vpop.f32.mrf.mxu0
  %873 = vdwg.mxu0
  %v874 = vld [vmem:[%s1] sm:$0xff]
  %v875 = vld [vmem:[%s3] sm:$0xff]
  %v876 = vld [vmem:[%s3 + $0x8] sm:$0xff]
  %v877 = vld [vmem:[%s3 + $0x10] sm:$0xff]
  %v878 = vld [vmem:[%s3 + $0x18] sm:$0xff]
  %v879 = vld [vmem:[%s3 + $0x20] sm:$0xff]
  %v880 = vld [vmem:[%s3 + $0x28] sm:$0xff]
  %v881 = vld [vmem:[%s3 + $0x30] sm:$0xff]
  %v882 = vld [vmem:[%s3 + $0x38] sm:$0xff]
  %v883 = vld [vmem:[%s3 + $0x40] sm:$0xff]
  %v884 = vld [vmem:[%s3 + $0x48] sm:$0xff]
  %v885 = vld [vmem:[%s3 + $0x50] sm:$0xff]
  %v886 = vld [vmem:[%s3 + $0x58] sm:$0xff]
  %v887 = vld [vmem:[%s3 + $0x60] sm:$0xff]
  %v888 = vld [vmem:[%s3 + $0x68] sm:$0xff]
  %v889 = vld [vmem:[%s3 + $0x70] sm:$0xff]
  %v890 = vld [vmem:[%s3 + $0x78] sm:$0xff]
  %v891 = vld [vmem:[%s4] sm:$0x1]
  %v893 = vlaneseq
  %v894 = vshrl.u32 %v893, 7
  %v895 = vsub.s32 0, %v894
  %v896 = vrot.slane %v891, %v895
  %898 = vmatprep.subr.mxu0 0.0
  %899 = vmatpush1.msra.mxu0 %v890
  %900 = vmatprep.subr.mxu0 0.0
  %901 = vmatpush1.msra.mxu0 %v889
  %902 = vmatprep.subr.mxu0 0.0
  %903 = vmatpush1.msra.mxu0 %v888
  %904 = vmatprep.subr.mxu0 0.0
  %905 = vmatpush1.msra.mxu0 %v887
  %906 = vmatprep.subr.mxu0 0.0
  %907 = vmatpush1.msra.mxu0 %v886
  %908 = vmatprep.subr.mxu0 0.0
  %909 = vmatpush1.msra.mxu0 %v885
  %910 = vmatprep.subr.mxu0 0.0
  %911 = vmatpush1.msra.mxu0 %v884
  %912 = vmatprep.subr.mxu0 0.0
  %913 = vmatpush1.msra.mxu0 %v883
  %914 = vmatprep.subr.mxu0 0.0
  %915 = vmatpush1.msra.mxu0 %v882
  %916 = vmatprep.subr.mxu0 0.0
  %917 = vmatpush1.msra.mxu0 %v881
  %918 = vmatprep.subr.mxu0 0.0
  %919 = vmatpush1.msra.mxu0 %v880
  %920 = vmatprep.subr.mxu0 0.0
  %921 = vmatpush1.msra.mxu0 %v879
  %922 = vmatprep.subr.mxu0 0.0
  %923 = vmatpush1.msra.mxu0 %v878
  %924 = vmatprep.subr.mxu0 0.0
  %925 = vmatpush1.msra.mxu0 %v877
  %926 = vmatprep.subr.mxu0 0.0
  %927 = vmatpush1.msra.mxu0 %v876
  %928 = vmatprep.subr.mxu0 0.0
  %929 = vmatpush1.msra.mxu0 %v875
  %930 = vmatprep.subr.mxu0 0.0
  %931 = vmatpush2.msra.mxu0 0.0
  %932 = vmatprep.subr.mxu0 0.0
  %933 = vmatpush2.msra.mxu0 0.0
  %934 = vmatprep.subr.mxu0 0.0
  %935 = vmatpush2.msra.mxu0 0.0
  %936 = vmatprep.subr.mxu0 0.0
  %937 = vmatpush2.msra.mxu0 0.0
  %938 = vmatprep.subr.mxu0 0.0
  %939 = vmatpush2.msra.mxu0 0.0
  %940 = vmatprep.subr.mxu0 0.0
  %941 = vmatpush2.msra.mxu0 0.0
  %942 = vmatprep.subr.mxu0 0.0
  %943 = vmatpush2.msra.mxu0 0.0
  %944 = vmatprep.subr.mxu0 0.0
  %945 = vmatpush2.msra.mxu0 0.0
  %946 = vmatprep.subr.mxu0 0.0
  %947 = vmatpush2.msra.mxu0 0.0
  %948 = vmatprep.subr.mxu0 0.0
  %949 = vmatpush2.msra.mxu0 0.0
  %950 = vmatprep.subr.mxu0 0.0
  %951 = vmatpush2.msra.mxu0 0.0
  %952 = vmatprep.subr.mxu0 0.0
  %953 = vmatpush2.msra.mxu0 0.0
  %954 = vmatprep.subr.mxu0 0.0
  %955 = vmatpush2.msra.mxu0 0.0
  %956 = vmatprep.subr.mxu0 0.0
  %957 = vmatpush2.msra.mxu0 0.0
  %958 = vmatprep.subr.mxu0 0.0
  %959 = vmatpush2.msra.mxu0 0.0
  %960 = vmatprep.subr.mxu0 0.0
  %961 = vmatpush2.msra.mxu0 0.0
  %962 = vmatprep.mubr.f32.mxu0 0.0
  %963 = vmatmul.mubr.f32.gmra.mxu0 %v874
  %v964 = vpop.f32.mrf.mxu0
  %v965 = vadd.f32 %v896, %v964
  %v966 = vpop.f32.mrf.mxu0
  %967 = vdwg.mxu0
  %v969 = vcombine.high %v965, %v965
  %v971 = vunpack.c.l.s4 1966171168
  %v972 = vunpack.c.0.s8 %v971
  %v973 = vlaneseq
  %v974 = vshrl.u32 %v973, 7
  %v975 = vsub.s32 %v972, %v974
  %v976 = vrot.slane %v965, %v975
  %v978 = vunpack.c.l.s4 1966171168
  %v979 = vunpack.c.0.s8 %v978
  %v980 = vlaneseq
  %v981 = vshrl.u32 %v980, 7
  %v982 = vsub.s32 %v979, %v981
  %v983 = vrot.slane %v969, %v982
  %v984 = vcombine.high %v976, %v976
  %v985 = vcombine.high %v983, %v983
  %v987 = vunpack.c.l.s4 1966171168
  %v988 = vunpack.c.0.s8 %v987
  %v989 = vlaneseq
  %v990 = vshrl.u32 %v989, 7
  %v991 = vsub.s32 %v988, %v990
  %v992 = vrot.slane %v976, %v991
  %v994 = vunpack.c.l.s4 1966171168
  %v995 = vunpack.c.0.s8 %v994
  %v996 = vlaneseq
  %v997 = vshrl.u32 %v996, 7
  %v998 = vsub.s32 %v995, %v997
  %v999 = vrot.slane %v983, %v998
  %v1001 = vunpack.c.l.s4 1966171168
  %v1002 = vunpack.c.0.s8 %v1001
  %v1003 = vlaneseq
  %v1004 = vshrl.u32 %v1003, 7
  %v1005 = vsub.s32 %v1002, %v1004
  %v1006 = vrot.slane %v984, %v1005
  %v1008 = vunpack.c.l.s4 1966171168
  %v1009 = vunpack.c.0.s8 %v1008
  %v1010 = vlaneseq
  %v1011 = vshrl.u32 %v1010, 7
  %v1012 = vsub.s32 %v1009, %v1011
  %v1013 = vrot.slane %v985, %v1012
  %v1014 = vcombine.high %v992, %v992
  %v1015 = vcombine.high %v999, %v999
  %v1016 = vcombine.high %v1006, %v1006
  %v1017 = vcombine.high %v1013, %v1013
  %v1018 = vlaneseq
  %v1019 = vshrl.u32 %v1018, 7
  %v1020 = vsub.s32 0, %v1019
  %v1021 = vrot.slane %v992, %v1020
  %v1022 = vlaneseq
  %v1023 = vshrl.u32 %v1022, 7
  %v1024 = vsub.s32 0, %v1023
  %v1025 = vrot.slane %v1006, %v1024
  %v1026 = vlaneseq
  %v1027 = vshrl.u32 %v1026, 7
  %v1028 = vsub.s32 0, %v1027
  %v1029 = vrot.slane %v1014, %v1028
  %v1030 = vlaneseq
  %v1031 = vshrl.u32 %v1030, 7
  %v1032 = vsub.s32 0, %v1031
  %v1033 = vrot.slane %v1016, %v1032
  %v1034 = vlaneseq
  %v1035 = vshrl.u32 %v1034, 7
  %v1036 = vsub.s32 0, %v1035
  %v1037 = vrot.slane %v999, %v1036
  %v1038 = vlaneseq
  %v1039 = vshrl.u32 %v1038, 7
  %v1040 = vsub.s32 0, %v1039
  %v1041 = vrot.slane %v1013, %v1040
  %v1042 = vlaneseq
  %v1043 = vshrl.u32 %v1042, 7
  %v1044 = vsub.s32 0, %v1043
  %v1045 = vrot.slane %v1015, %v1044
  %v1046 = vlaneseq
  %v1047 = vshrl.u32 %v1046, 7
  %v1048 = vsub.s32 0, %v1047
  %v1049 = vrot.slane %v1017, %v1048
  %v1058 = vadd.f32 %v236, %v1021
  %v1059 = vadd.f32 %v241, %v1021
  %v1060 = vadd.f32 %v246, %v1021
  %v1061 = vadd.f32 %v251, %v1021
  %v1062 = vadd.f32 %v256, %v1021
  %v1063 = vadd.f32 %v261, %v1021
  %v1064 = vadd.f32 %v266, %v1021
  %v1065 = vadd.f32 %v271, %v1021
  %v1066 = vadd.f32 %v276, %v1021
  %v1067 = vadd.f32 %v281, %v1021
  %v1068 = vadd.f32 %v286, %v1021
  %v1069 = vadd.f32 %v291, %v1021
  %v1070 = vadd.f32 %v296, %v1021
  %v1071 = vadd.f32 %v301, %v1021
  %v1072 = vadd.f32 %v306, %v1021
  %v1073 = vadd.f32 %v311, %v1021
  %v1074 = vadd.f32 %v316, %v1025
  %v1075 = vadd.f32 %v321, %v1025
  %v1076 = vadd.f32 %v326, %v1025
  %v1077 = vadd.f32 %v331, %v1025
  %v1078 = vadd.f32 %v336, %v1025
  %v1079 = vadd.f32 %v341, %v1025
  %v1080 = vadd.f32 %v346, %v1025
  %v1081 = vadd.f32 %v351, %v1025
  %v1082 = vadd.f32 %v356, %v1025
  %v1083 = vadd.f32 %v361, %v1025
  %v1084 = vadd.f32 %v366, %v1025
  %v1085 = vadd.f32 %v371, %v1025
  %v1086 = vadd.f32 %v376, %v1025
  %v1087 = vadd.f32 %v381, %v1025
  %v1088 = vadd.f32 %v386, %v1025
  %v1089 = vadd.f32 %v391, %v1025
  %v1090 = vadd.f32 %v396, %v1029
  %v1091 = vadd.f32 %v401, %v1029
  %v1092 = vadd.f32 %v406, %v1029
  %v1093 = vadd.f32 %v411, %v1029
  %v1094 = vadd.f32 %v416, %v1029
  %v1095 = vadd.f32 %v421, %v1029
  %v1096 = vadd.f32 %v426, %v1029
  %v1097 = vadd.f32 %v431, %v1029
  %v1098 = vadd.f32 %v436, %v1029
  %v1099 = vadd.f32 %v441, %v1029
  %v1100 = vadd.f32 %v446, %v1029
  %v1101 = vadd.f32 %v451, %v1029
  %v1102 = vadd.f32 %v456, %v1029
  %v1103 = vadd.f32 %v461, %v1029
  %v1104 = vadd.f32 %v466, %v1029
  %v1105 = vadd.f32 %v471, %v1029
  %v1106 = vadd.f32 %v476, %v1033
  %v1107 = vadd.f32 %v481, %v1033
  %v1108 = vadd.f32 %v486, %v1033
  %v1109 = vadd.f32 %v491, %v1033
  %v1110 = vadd.f32 %v496, %v1033
  %v1111 = vadd.f32 %v501, %v1033
  %v1112 = vadd.f32 %v506, %v1033
  %v1113 = vadd.f32 %v511, %v1033
  %v1114 = vadd.f32 %v516, %v1033
  %v1115 = vadd.f32 %v521, %v1033
  %v1116 = vadd.f32 %v526, %v1033
  %v1117 = vadd.f32 %v531, %v1033
  %v1118 = vadd.f32 %v536, %v1033
  %v1119 = vadd.f32 %v541, %v1033
  %v1120 = vadd.f32 %v546, %v1033
  %v1121 = vadd.f32 %v551, %v1033
  %v1122 = vadd.f32 %v556, %v1037
  %v1123 = vadd.f32 %v561, %v1037
  %v1124 = vadd.f32 %v566, %v1037
  %v1125 = vadd.f32 %v571, %v1037
  %v1126 = vadd.f32 %v576, %v1037
  %v1127 = vadd.f32 %v581, %v1037
  %v1128 = vadd.f32 %v586, %v1037
  %v1129 = vadd.f32 %v591, %v1037
  %v1130 = vadd.f32 %v596, %v1037
  %v1131 = vadd.f32 %v601, %v1037
  %v1132 = vadd.f32 %v606, %v1037
  %v1133 = vadd.f32 %v611, %v1037
  %v1134 = vadd.f32 %v616, %v1037
  %v1135 = vadd.f32 %v621, %v1037
  %v1136 = vadd.f32 %v626, %v1037
  %v1137 = vadd.f32 %v631, %v1037
  %v1138 = vadd.f32 %v636, %v1041
  %v1139 = vadd.f32 %v641, %v1041
  %v1140 = vadd.f32 %v646, %v1041
  %v1141 = vadd.f32 %v651, %v1041
  %v1142 = vadd.f32 %v656, %v1041
  %v1143 = vadd.f32 %v661, %v1041
  %v1144 = vadd.f32 %v666, %v1041
  %v1145 = vadd.f32 %v671, %v1041
  %v1146 = vadd.f32 %v676, %v1041
  %v1147 = vadd.f32 %v681, %v1041
  %v1148 = vadd.f32 %v686, %v1041
  %v1149 = vadd.f32 %v691, %v1041
  %v1150 = vadd.f32 %v696, %v1041
  %v1151 = vadd.f32 %v701, %v1041
  %v1152 = vadd.f32 %v706, %v1041
  %v1153 = vadd.f32 %v711, %v1041
  %v1154 = vadd.f32 %v716, %v1045
  %v1155 = vadd.f32 %v721, %v1045
  %v1156 = vadd.f32 %v726, %v1045
  %v1157 = vadd.f32 %v731, %v1045
  %v1158 = vadd.f32 %v736, %v1045
  %v1159 = vadd.f32 %v741, %v1045
  %v1160 = vadd.f32 %v746, %v1045
  %v1161 = vadd.f32 %v751, %v1045
  %v1162 = vadd.f32 %v756, %v1045
  %v1163 = vadd.f32 %v761, %v1045
  %v1164 = vadd.f32 %v766, %v1045
  %v1165 = vadd.f32 %v771, %v1045
  %v1166 = vadd.f32 %v776, %v1045
  %v1167 = vadd.f32 %v781, %v1045
  %v1168 = vadd.f32 %v786, %v1045
  %v1169 = vadd.f32 %v791, %v1045
  %v1170 = vadd.f32 %v796, %v1049
  %v1171 = vadd.f32 %v801, %v1049
  %v1172 = vadd.f32 %v806, %v1049
  %v1173 = vadd.f32 %v811, %v1049
  %v1174 = vadd.f32 %v816, %v1049
  %v1175 = vadd.f32 %v821, %v1049
  %v1176 = vadd.f32 %v826, %v1049
  %v1177 = vadd.f32 %v831, %v1049
  %v1178 = vadd.f32 %v836, %v1049
  %v1179 = vadd.f32 %v841, %v1049
  %v1180 = vadd.f32 %v846, %v1049
  %v1181 = vadd.f32 %v851, %v1049
  %v1182 = vadd.f32 %v856, %v1049
  %v1183 = vadd.f32 %v861, %v1049
  %v1184 = vadd.f32 %v866, %v1049
  %v1185 = vadd.f32 %v871, %v1049
  %v1186 = vmax.f32 %v1058, 0.0
  %v1187 = vmax.f32 %v1059, 0.0
  %v1188 = vmax.f32 %v1060, 0.0
  %v1189 = vmax.f32 %v1061, 0.0
  %v1190 = vmax.f32 %v1062, 0.0
  %v1191 = vmax.f32 %v1063, 0.0
  %v1192 = vmax.f32 %v1064, 0.0
  %v1193 = vmax.f32 %v1065, 0.0
  %v1194 = vmax.f32 %v1066, 0.0
  %v1195 = vmax.f32 %v1067, 0.0
  %v1196 = vmax.f32 %v1068, 0.0
  %v1197 = vmax.f32 %v1069, 0.0
  %v1198 = vmax.f32 %v1070, 0.0
  %v1199 = vmax.f32 %v1071, 0.0
  %v1200 = vmax.f32 %v1072, 0.0
  %v1201 = vmax.f32 %v1073, 0.0
  %v1202 = vmax.f32 %v1074, 0.0
  %v1203 = vmax.f32 %v1075, 0.0
  %v1204 = vmax.f32 %v1076, 0.0
  %v1205 = vmax.f32 %v1077, 0.0
  %v1206 = vmax.f32 %v1078, 0.0
  %v1207 = vmax.f32 %v1079, 0.0
  %v1208 = vmax.f32 %v1080, 0.0
  %v1209 = vmax.f32 %v1081, 0.0
  %v1210 = vmax.f32 %v1082, 0.0
  %v1211 = vmax.f32 %v1083, 0.0
  %v1212 = vmax.f32 %v1084, 0.0
  %v1213 = vmax.f32 %v1085, 0.0
  %v1214 = vmax.f32 %v1086, 0.0
  %v1215 = vmax.f32 %v1087, 0.0
  %v1216 = vmax.f32 %v1088, 0.0
  %v1217 = vmax.f32 %v1089, 0.0
  %v1218 = vmax.f32 %v1090, 0.0
  %v1219 = vmax.f32 %v1091, 0.0
  %v1220 = vmax.f32 %v1092, 0.0
  %v1221 = vmax.f32 %v1093, 0.0
  %v1222 = vmax.f32 %v1094, 0.0
  %v1223 = vmax.f32 %v1095, 0.0
  %v1224 = vmax.f32 %v1096, 0.0
  %v1225 = vmax.f32 %v1097, 0.0
  %v1226 = vmax.f32 %v1098, 0.0
  %v1227 = vmax.f32 %v1099, 0.0
  %v1228 = vmax.f32 %v1100, 0.0
  %v1229 = vmax.f32 %v1101, 0.0
  %v1230 = vmax.f32 %v1102, 0.0
  %v1231 = vmax.f32 %v1103, 0.0
  %v1232 = vmax.f32 %v1104, 0.0
  %v1233 = vmax.f32 %v1105, 0.0
  %v1234 = vmax.f32 %v1106, 0.0
  %v1235 = vmax.f32 %v1107, 0.0
  %v1236 = vmax.f32 %v1108, 0.0
  %v1237 = vmax.f32 %v1109, 0.0
  %v1238 = vmax.f32 %v1110, 0.0
  %v1239 = vmax.f32 %v1111, 0.0
  %v1240 = vmax.f32 %v1112, 0.0
  %v1241 = vmax.f32 %v1113, 0.0
  %v1242 = vmax.f32 %v1114, 0.0
  %v1243 = vmax.f32 %v1115, 0.0
  %v1244 = vmax.f32 %v1116, 0.0
  %v1245 = vmax.f32 %v1117, 0.0
  %v1246 = vmax.f32 %v1118, 0.0
  %v1247 = vmax.f32 %v1119, 0.0
  %v1248 = vmax.f32 %v1120, 0.0
  %v1249 = vmax.f32 %v1121, 0.0
  %v1250 = vmax.f32 %v1122, 0.0
  %v1251 = vmax.f32 %v1123, 0.0
  %v1252 = vmax.f32 %v1124, 0.0
  %v1253 = vmax.f32 %v1125, 0.0
  %v1254 = vmax.f32 %v1126, 0.0
  %v1255 = vmax.f32 %v1127, 0.0
  %v1256 = vmax.f32 %v1128, 0.0
  %v1257 = vmax.f32 %v1129, 0.0
  %v1258 = vmax.f32 %v1130, 0.0
  %v1259 = vmax.f32 %v1131, 0.0
  %v1260 = vmax.f32 %v1132, 0.0
  %v1261 = vmax.f32 %v1133, 0.0
  %v1262 = vmax.f32 %v1134, 0.0
  %v1263 = vmax.f32 %v1135, 0.0
  %v1264 = vmax.f32 %v1136, 0.0
  %v1265 = vmax.f32 %v1137, 0.0
  %v1266 = vmax.f32 %v1138, 0.0
  %v1267 = vmax.f32 %v1139, 0.0
  %v1268 = vmax.f32 %v1140, 0.0
  %v1269 = vmax.f32 %v1141, 0.0
  %v1270 = vmax.f32 %v1142, 0.0
  %v1271 = vmax.f32 %v1143, 0.0
  %v1272 = vmax.f32 %v1144, 0.0
  %v1273 = vmax.f32 %v1145, 0.0
  %v1274 = vmax.f32 %v1146, 0.0
  %v1275 = vmax.f32 %v1147, 0.0
  %v1276 = vmax.f32 %v1148, 0.0
  %v1277 = vmax.f32 %v1149, 0.0
  %v1278 = vmax.f32 %v1150, 0.0
  %v1279 = vmax.f32 %v1151, 0.0
  %v1280 = vmax.f32 %v1152, 0.0
  %v1281 = vmax.f32 %v1153, 0.0
  %v1282 = vmax.f32 %v1154, 0.0
  %v1283 = vmax.f32 %v1155, 0.0
  %v1284 = vmax.f32 %v1156, 0.0
  %v1285 = vmax.f32 %v1157, 0.0
  %v1286 = vmax.f32 %v1158, 0.0
  %v1287 = vmax.f32 %v1159, 0.0
  %v1288 = vmax.f32 %v1160, 0.0
  %v1289 = vmax.f32 %v1161, 0.0
  %v1290 = vmax.f32 %v1162, 0.0
  %v1291 = vmax.f32 %v1163, 0.0
  %v1292 = vmax.f32 %v1164, 0.0
  %v1293 = vmax.f32 %v1165, 0.0
  %v1294 = vmax.f32 %v1166, 0.0
  %v1295 = vmax.f32 %v1167, 0.0
  %v1296 = vmax.f32 %v1168, 0.0
  %v1297 = vmax.f32 %v1169, 0.0
  %v1298 = vmax.f32 %v1170, 0.0
  %v1299 = vmax.f32 %v1171, 0.0
  %v1300 = vmax.f32 %v1172, 0.0
  %v1301 = vmax.f32 %v1173, 0.0
  %v1302 = vmax.f32 %v1174, 0.0
  %v1303 = vmax.f32 %v1175, 0.0
  %v1304 = vmax.f32 %v1176, 0.0
  %v1305 = vmax.f32 %v1177, 0.0
  %v1306 = vmax.f32 %v1178, 0.0
  %v1307 = vmax.f32 %v1179, 0.0
  %v1308 = vmax.f32 %v1180, 0.0
  %v1309 = vmax.f32 %v1181, 0.0
  %v1310 = vmax.f32 %v1182, 0.0
  %v1311 = vmax.f32 %v1183, 0.0
  %v1312 = vmax.f32 %v1184, 0.0
  %v1313 = vmax.f32 %v1185, 0.0
  %v1314 = vld [vmem:[%s5] sm:$0x1]
  %v1316 = vlaneseq
  %v1317 = vshrl.u32 %v1316, 7
  %v1318 = vsub.s32 0, %v1317
  %v1319 = vrot.slane %v1314, %v1318
  %v1321 = vmul.f32 %v1186, %v1319
  %v1322 = vmul.f32 %v1187, %v1319
  %v1323 = vmul.f32 %v1188, %v1319
  %v1324 = vmul.f32 %v1189, %v1319
  %v1325 = vmul.f32 %v1190, %v1319
  %v1326 = vmul.f32 %v1191, %v1319
  %v1327 = vmul.f32 %v1192, %v1319
  %v1328 = vmul.f32 %v1193, %v1319
  %v1329 = vmul.f32 %v1194, %v1319
  %v1330 = vmul.f32 %v1195, %v1319
  %v1331 = vmul.f32 %v1196, %v1319
  %v1332 = vmul.f32 %v1197, %v1319
  %v1333 = vmul.f32 %v1198, %v1319
  %v1334 = vmul.f32 %v1199, %v1319
  %v1335 = vmul.f32 %v1200, %v1319
  %v1336 = vmul.f32 %v1201, %v1319
  %v1337 = vmul.f32 %v1202, %v1319
  %v1338 = vmul.f32 %v1203, %v1319
  %v1339 = vmul.f32 %v1204, %v1319
  %v1340 = vmul.f32 %v1205, %v1319
  %v1341 = vmul.f32 %v1206, %v1319
  %v1342 = vmul.f32 %v1207, %v1319
  %v1343 = vmul.f32 %v1208, %v1319
  %v1344 = vmul.f32 %v1209, %v1319
  %v1345 = vmul.f32 %v1210, %v1319
  %v1346 = vmul.f32 %v1211, %v1319
  %v1347 = vmul.f32 %v1212, %v1319
  %v1348 = vmul.f32 %v1213, %v1319
  %v1349 = vmul.f32 %v1214, %v1319
  %v1350 = vmul.f32 %v1215, %v1319
  %v1351 = vmul.f32 %v1216, %v1319
  %v1352 = vmul.f32 %v1217, %v1319
  %v1353 = vmul.f32 %v1218, %v1319
  %v1354 = vmul.f32 %v1219, %v1319
  %v1355 = vmul.f32 %v1220, %v1319
  %v1356 = vmul.f32 %v1221, %v1319
  %v1357 = vmul.f32 %v1222, %v1319
  %v1358 = vmul.f32 %v1223, %v1319
  %v1359 = vmul.f32 %v1224, %v1319
  %v1360 = vmul.f32 %v1225, %v1319
  %v1361 = vmul.f32 %v1226, %v1319
  %v1362 = vmul.f32 %v1227, %v1319
  %v1363 = vmul.f32 %v1228, %v1319
  %v1364 = vmul.f32 %v1229, %v1319
  %v1365 = vmul.f32 %v1230, %v1319
  %v1366 = vmul.f32 %v1231, %v1319
  %v1367 = vmul.f32 %v1232, %v1319
  %v1368 = vmul.f32 %v1233, %v1319
  %v1369 = vmul.f32 %v1234, %v1319
  %v1370 = vmul.f32 %v1235, %v1319
  %v1371 = vmul.f32 %v1236, %v1319
  %v1372 = vmul.f32 %v1237, %v1319
  %v1373 = vmul.f32 %v1238, %v1319
  %v1374 = vmul.f32 %v1239, %v1319
  %v1375 = vmul.f32 %v1240, %v1319
  %v1376 = vmul.f32 %v1241, %v1319
  %v1377 = vmul.f32 %v1242, %v1319
  %v1378 = vmul.f32 %v1243, %v1319
  %v1379 = vmul.f32 %v1244, %v1319
  %v1380 = vmul.f32 %v1245, %v1319
  %v1381 = vmul.f32 %v1246, %v1319
  %v1382 = vmul.f32 %v1247, %v1319
  %v1383 = vmul.f32 %v1248, %v1319
  %v1384 = vmul.f32 %v1249, %v1319
  %v1385 = vmul.f32 %v1250, %v1319
  %v1386 = vmul.f32 %v1251, %v1319
  %v1387 = vmul.f32 %v1252, %v1319
  %v1388 = vmul.f32 %v1253, %v1319
  %v1389 = vmul.f32 %v1254, %v1319
  %v1390 = vmul.f32 %v1255, %v1319
  %v1391 = vmul.f32 %v1256, %v1319
  %v1392 = vmul.f32 %v1257, %v1319
  %v1393 = vmul.f32 %v1258, %v1319
  %v1394 = vmul.f32 %v1259, %v1319
  %v1395 = vmul.f32 %v1260, %v1319
  %v1396 = vmul.f32 %v1261, %v1319
  %v1397 = vmul.f32 %v1262, %v1319
  %v1398 = vmul.f32 %v1263, %v1319
  %v1399 = vmul.f32 %v1264, %v1319
  %v1400 = vmul.f32 %v1265, %v1319
  %v1401 = vmul.f32 %v1266, %v1319
  %v1402 = vmul.f32 %v1267, %v1319
  %v1403 = vmul.f32 %v1268, %v1319
  %v1404 = vmul.f32 %v1269, %v1319
  %v1405 = vmul.f32 %v1270, %v1319
  %v1406 = vmul.f32 %v1271, %v1319
  %v1407 = vmul.f32 %v1272, %v1319
  %v1408 = vmul.f32 %v1273, %v1319
  %v1409 = vmul.f32 %v1274, %v1319
  %v1410 = vmul.f32 %v1275, %v1319
  %v1411 = vmul.f32 %v1276, %v1319
  %v1412 = vmul.f32 %v1277, %v1319
  %v1413 = vmul.f32 %v1278, %v1319
  %v1414 = vmul.f32 %v1279, %v1319
  %v1415 = vmul.f32 %v1280, %v1319
  %v1416 = vmul.f32 %v1281, %v1319
  %v1417 = vmul.f32 %v1282, %v1319
  %v1418 = vmul.f32 %v1283, %v1319
  %v1419 = vmul.f32 %v1284, %v1319
  %v1420 = vmul.f32 %v1285, %v1319
  %v1421 = vmul.f32 %v1286, %v1319
  %v1422 = vmul.f32 %v1287, %v1319
  %v1423 = vmul.f32 %v1288, %v1319
  %v1424 = vmul.f32 %v1289, %v1319
  %v1425 = vmul.f32 %v1290, %v1319
  %v1426 = vmul.f32 %v1291, %v1319
  %v1427 = vmul.f32 %v1292, %v1319
  %v1428 = vmul.f32 %v1293, %v1319
  %v1429 = vmul.f32 %v1294, %v1319
  %v1430 = vmul.f32 %v1295, %v1319
  %v1431 = vmul.f32 %v1296, %v1319
  %v1432 = vmul.f32 %v1297, %v1319
  %v1433 = vmul.f32 %v1298, %v1319
  %v1434 = vmul.f32 %v1299, %v1319
  %v1435 = vmul.f32 %v1300, %v1319
  %v1436 = vmul.f32 %v1301, %v1319
  %v1437 = vmul.f32 %v1302, %v1319
  %v1438 = vmul.f32 %v1303, %v1319
  %v1439 = vmul.f32 %v1304, %v1319
  %v1440 = vmul.f32 %v1305, %v1319
  %v1441 = vmul.f32 %v1306, %v1319
  %v1442 = vmul.f32 %v1307, %v1319
  %v1443 = vmul.f32 %v1308, %v1319
  %v1444 = vmul.f32 %v1309, %v1319
  %v1445 = vmul.f32 %v1310, %v1319
  %v1446 = vmul.f32 %v1311, %v1319
  %v1447 = vmul.f32 %v1312, %v1319
  %v1448 = vmul.f32 %v1313, %v1319
  %1449 = vadd.xlane.f32.xlu0 %v1321
  %v1450 = vpop.xlane.xlu0 %1449
  %1451 = vadd.xlane.f32.xlu0 %v1322
  %v1452 = vpop.xlane.xlu0 %1451
  %1453 = vadd.xlane.f32.xlu0 %v1323
  %v1454 = vpop.xlane.xlu0 %1453
  %1455 = vadd.xlane.f32.xlu0 %v1324
  %v1456 = vpop.xlane.xlu0 %1455
  %1457 = vadd.xlane.f32.xlu0 %v1325
  %v1458 = vpop.xlane.xlu0 %1457
  %1459 = vadd.xlane.f32.xlu0 %v1326
  %v1460 = vpop.xlane.xlu0 %1459
  %1461 = vadd.xlane.f32.xlu0 %v1327
  %v1462 = vpop.xlane.xlu0 %1461
  %1463 = vadd.xlane.f32.xlu0 %v1328
  %v1464 = vpop.xlane.xlu0 %1463
  %1465 = vadd.xlane.f32.xlu0 %v1329
  %v1466 = vpop.xlane.xlu0 %1465
  %1467 = vadd.xlane.f32.xlu0 %v1330
  %v1468 = vpop.xlane.xlu0 %1467
  %1469 = vadd.xlane.f32.xlu0 %v1331
  %v1470 = vpop.xlane.xlu0 %1469
  %1471 = vadd.xlane.f32.xlu0 %v1332
  %v1472 = vpop.xlane.xlu0 %1471
  %1473 = vadd.xlane.f32.xlu0 %v1333
  %v1474 = vpop.xlane.xlu0 %1473
  %1475 = vadd.xlane.f32.xlu0 %v1334
  %v1476 = vpop.xlane.xlu0 %1475
  %1477 = vadd.xlane.f32.xlu0 %v1335
  %v1478 = vpop.xlane.xlu0 %1477
  %1479 = vadd.xlane.f32.xlu0 %v1336
  %v1480 = vpop.xlane.xlu0 %1479
  %1481 = vadd.xlane.f32.xlu0 %v1337
  %v1482 = vpop.xlane.xlu0 %1481
  %1483 = vadd.xlane.f32.xlu0 %v1338
  %v1484 = vpop.xlane.xlu0 %1483
  %1485 = vadd.xlane.f32.xlu0 %v1339
  %v1486 = vpop.xlane.xlu0 %1485
  %1487 = vadd.xlane.f32.xlu0 %v1340
  %v1488 = vpop.xlane.xlu0 %1487
  %1489 = vadd.xlane.f32.xlu0 %v1341
  %v1490 = vpop.xlane.xlu0 %1489
  %1491 = vadd.xlane.f32.xlu0 %v1342
  %v1492 = vpop.xlane.xlu0 %1491
  %1493 = vadd.xlane.f32.xlu0 %v1343
  %v1494 = vpop.xlane.xlu0 %1493
  %1495 = vadd.xlane.f32.xlu0 %v1344
  %v1496 = vpop.xlane.xlu0 %1495
  %1497 = vadd.xlane.f32.xlu0 %v1345
  %v1498 = vpop.xlane.xlu0 %1497
  %1499 = vadd.xlane.f32.xlu0 %v1346
  %v1500 = vpop.xlane.xlu0 %1499
  %1501 = vadd.xlane.f32.xlu0 %v1347
  %v1502 = vpop.xlane.xlu0 %1501
  %1503 = vadd.xlane.f32.xlu0 %v1348
  %v1504 = vpop.xlane.xlu0 %1503
  %1505 = vadd.xlane.f32.xlu0 %v1349
  %v1506 = vpop.xlane.xlu0 %1505
  %1507 = vadd.xlane.f32.xlu0 %v1350
  %v1508 = vpop.xlane.xlu0 %1507
  %1509 = vadd.xlane.f32.xlu0 %v1351
  %v1510 = vpop.xlane.xlu0 %1509
  %1511 = vadd.xlane.f32.xlu0 %v1352
  %v1512 = vpop.xlane.xlu0 %1511
  %1513 = vadd.xlane.f32.xlu0 %v1353
  %v1514 = vpop.xlane.xlu0 %1513
  %1515 = vadd.xlane.f32.xlu0 %v1354
  %v1516 = vpop.xlane.xlu0 %1515
  %1517 = vadd.xlane.f32.xlu0 %v1355
  %v1518 = vpop.xlane.xlu0 %1517
  %1519 = vadd.xlane.f32.xlu0 %v1356
  %v1520 = vpop.xlane.xlu0 %1519
  %1521 = vadd.xlane.f32.xlu0 %v1357
  %v1522 = vpop.xlane.xlu0 %1521
  %1523 = vadd.xlane.f32.xlu0 %v1358
  %v1524 = vpop.xlane.xlu0 %1523
  %1525 = vadd.xlane.f32.xlu0 %v1359
  %v1526 = vpop.xlane.xlu0 %1525
  %1527 = vadd.xlane.f32.xlu0 %v1360
  %v1528 = vpop.xlane.xlu0 %1527
  %1529 = vadd.xlane.f32.xlu0 %v1361
  %v1530 = vpop.xlane.xlu0 %1529
  %1531 = vadd.xlane.f32.xlu0 %v1362
  %v1532 = vpop.xlane.xlu0 %1531
  %1533 = vadd.xlane.f32.xlu0 %v1363
  %v1534 = vpop.xlane.xlu0 %1533
  %1535 = vadd.xlane.f32.xlu0 %v1364
  %v1536 = vpop.xlane.xlu0 %1535
  %1537 = vadd.xlane.f32.xlu0 %v1365
  %v1538 = vpop.xlane.xlu0 %1537
  %1539 = vadd.xlane.f32.xlu0 %v1366
  %v1540 = vpop.xlane.xlu0 %1539
  %1541 = vadd.xlane.f32.xlu0 %v1367
  %v1542 = vpop.xlane.xlu0 %1541
  %1543 = vadd.xlane.f32.xlu0 %v1368
  %v1544 = vpop.xlane.xlu0 %1543
  %1545 = vadd.xlane.f32.xlu0 %v1369
  %v1546 = vpop.xlane.xlu0 %1545
  %1547 = vadd.xlane.f32.xlu0 %v1370
  %v1548 = vpop.xlane.xlu0 %1547
  %1549 = vadd.xlane.f32.xlu0 %v1371
  %v1550 = vpop.xlane.xlu0 %1549
  %1551 = vadd.xlane.f32.xlu0 %v1372
  %v1552 = vpop.xlane.xlu0 %1551
  %1553 = vadd.xlane.f32.xlu0 %v1373
  %v1554 = vpop.xlane.xlu0 %1553
  %1555 = vadd.xlane.f32.xlu0 %v1374
  %v1556 = vpop.xlane.xlu0 %1555
  %1557 = vadd.xlane.f32.xlu0 %v1375
  %v1558 = vpop.xlane.xlu0 %1557
  %1559 = vadd.xlane.f32.xlu0 %v1376
  %v1560 = vpop.xlane.xlu0 %1559
  %1561 = vadd.xlane.f32.xlu0 %v1377
  %v1562 = vpop.xlane.xlu0 %1561
  %1563 = vadd.xlane.f32.xlu0 %v1378
  %v1564 = vpop.xlane.xlu0 %1563
  %1565 = vadd.xlane.f32.xlu0 %v1379
  %v1566 = vpop.xlane.xlu0 %1565
  %1567 = vadd.xlane.f32.xlu0 %v1380
  %v1568 = vpop.xlane.xlu0 %1567
  %1569 = vadd.xlane.f32.xlu0 %v1381
  %v1570 = vpop.xlane.xlu0 %1569
  %1571 = vadd.xlane.f32.xlu0 %v1382
  %v1572 = vpop.xlane.xlu0 %1571
  %1573 = vadd.xlane.f32.xlu0 %v1383
  %v1574 = vpop.xlane.xlu0 %1573
  %1575 = vadd.xlane.f32.xlu0 %v1384
  %v1576 = vpop.xlane.xlu0 %1575
  %1577 = vadd.xlane.f32.xlu0 %v1385
  %v1578 = vpop.xlane.xlu0 %1577
  %1579 = vadd.xlane.f32.xlu0 %v1386
  %v1580 = vpop.xlane.xlu0 %1579
  %1581 = vadd.xlane.f32.xlu0 %v1387
  %v1582 = vpop.xlane.xlu0 %1581
  %1583 = vadd.xlane.f32.xlu0 %v1388
  %v1584 = vpop.xlane.xlu0 %1583
  %1585 = vadd.xlane.f32.xlu0 %v1389
  %v1586 = vpop.xlane.xlu0 %1585
  %1587 = vadd.xlane.f32.xlu0 %v1390
  %v1588 = vpop.xlane.xlu0 %1587
  %1589 = vadd.xlane.f32.xlu0 %v1391
  %v1590 = vpop.xlane.xlu0 %1589
  %1591 = vadd.xlane.f32.xlu0 %v1392
  %v1592 = vpop.xlane.xlu0 %1591
  %1593 = vadd.xlane.f32.xlu0 %v1393
  %v1594 = vpop.xlane.xlu0 %1593
  %1595 = vadd.xlane.f32.xlu0 %v1394
  %v1596 = vpop.xlane.xlu0 %1595
  %1597 = vadd.xlane.f32.xlu0 %v1395
  %v1598 = vpop.xlane.xlu0 %1597
  %1599 = vadd.xlane.f32.xlu0 %v1396
  %v1600 = vpop.xlane.xlu0 %1599
  %1601 = vadd.xlane.f32.xlu0 %v1397
  %v1602 = vpop.xlane.xlu0 %1601
  %1603 = vadd.xlane.f32.xlu0 %v1398
  %v1604 = vpop.xlane.xlu0 %1603
  %1605 = vadd.xlane.f32.xlu0 %v1399
  %v1606 = vpop.xlane.xlu0 %1605
  %1607 = vadd.xlane.f32.xlu0 %v1400
  %v1608 = vpop.xlane.xlu0 %1607
  %1609 = vadd.xlane.f32.xlu0 %v1401
  %v1610 = vpop.xlane.xlu0 %1609
  %1611 = vadd.xlane.f32.xlu0 %v1402
  %v1612 = vpop.xlane.xlu0 %1611
  %1613 = vadd.xlane.f32.xlu0 %v1403
  %v1614 = vpop.xlane.xlu0 %1613
  %1615 = vadd.xlane.f32.xlu0 %v1404
  %v1616 = vpop.xlane.xlu0 %1615
  %1617 = vadd.xlane.f32.xlu0 %v1405
  %v1618 = vpop.xlane.xlu0 %1617
  %1619 = vadd.xlane.f32.xlu0 %v1406
  %v1620 = vpop.xlane.xlu0 %1619
  %1621 = vadd.xlane.f32.xlu0 %v1407
  %v1622 = vpop.xlane.xlu0 %1621
  %1623 = vadd.xlane.f32.xlu0 %v1408
  %v1624 = vpop.xlane.xlu0 %1623
  %1625 = vadd.xlane.f32.xlu0 %v1409
  %v1626 = vpop.xlane.xlu0 %1625
  %1627 = vadd.xlane.f32.xlu0 %v1410
  %v1628 = vpop.xlane.xlu0 %1627
  %1629 = vadd.xlane.f32.xlu0 %v1411
  %v1630 = vpop.xlane.xlu0 %1629
  %1631 = vadd.xlane.f32.xlu0 %v1412
  %v1632 = vpop.xlane.xlu0 %1631
  %1633 = vadd.xlane.f32.xlu0 %v1413
  %v1634 = vpop.xlane.xlu0 %1633
  %1635 = vadd.xlane.f32.xlu0 %v1414
  %v1636 = vpop.xlane.xlu0 %1635
  %1637 = vadd.xlane.f32.xlu0 %v1415
  %v1638 = vpop.xlane.xlu0 %1637
  %1639 = vadd.xlane.f32.xlu0 %v1416
  %v1640 = vpop.xlane.xlu0 %1639
  %1641 = vadd.xlane.f32.xlu0 %v1417
  %v1642 = vpop.xlane.xlu0 %1641
  %1643 = vadd.xlane.f32.xlu0 %v1418
  %v1644 = vpop.xlane.xlu0 %1643
  %1645 = vadd.xlane.f32.xlu0 %v1419
  %v1646 = vpop.xlane.xlu0 %1645
  %1647 = vadd.xlane.f32.xlu0 %v1420
  %v1648 = vpop.xlane.xlu0 %1647
  %1649 = vadd.xlane.f32.xlu0 %v1421
  %v1650 = vpop.xlane.xlu0 %1649
  %1651 = vadd.xlane.f32.xlu0 %v1422
  %v1652 = vpop.xlane.xlu0 %1651
  %1653 = vadd.xlane.f32.xlu0 %v1423
  %v1654 = vpop.xlane.xlu0 %1653
  %1655 = vadd.xlane.f32.xlu0 %v1424
  %v1656 = vpop.xlane.xlu0 %1655
  %1657 = vadd.xlane.f32.xlu0 %v1425
  %v1658 = vpop.xlane.xlu0 %1657
  %1659 = vadd.xlane.f32.xlu0 %v1426
  %v1660 = vpop.xlane.xlu0 %1659
  %1661 = vadd.xlane.f32.xlu0 %v1427
  %v1662 = vpop.xlane.xlu0 %1661
  %1663 = vadd.xlane.f32.xlu0 %v1428
  %v1664 = vpop.xlane.xlu0 %1663
  %1665 = vadd.xlane.f32.xlu0 %v1429
  %v1666 = vpop.xlane.xlu0 %1665
  %1667 = vadd.xlane.f32.xlu0 %v1430
  %v1668 = vpop.xlane.xlu0 %1667
  %1669 = vadd.xlane.f32.xlu0 %v1431
  %v1670 = vpop.xlane.xlu0 %1669
  %1671 = vadd.xlane.f32.xlu0 %v1432
  %v1672 = vpop.xlane.xlu0 %1671
  %1673 = vadd.xlane.f32.xlu0 %v1433
  %v1674 = vpop.xlane.xlu0 %1673
  %1675 = vadd.xlane.f32.xlu0 %v1434
  %v1676 = vpop.xlane.xlu0 %1675
  %1677 = vadd.xlane.f32.xlu0 %v1435
  %v1678 = vpop.xlane.xlu0 %1677
  %1679 = vadd.xlane.f32.xlu0 %v1436
  %v1680 = vpop.xlane.xlu0 %1679
  %1681 = vadd.xlane.f32.xlu0 %v1437
  %v1682 = vpop.xlane.xlu0 %1681
  %1683 = vadd.xlane.f32.xlu0 %v1438
  %v1684 = vpop.xlane.xlu0 %1683
  %1685 = vadd.xlane.f32.xlu0 %v1439
  %v1686 = vpop.xlane.xlu0 %1685
  %1687 = vadd.xlane.f32.xlu0 %v1440
  %v1688 = vpop.xlane.xlu0 %1687
  %1689 = vadd.xlane.f32.xlu0 %v1441
  %v1690 = vpop.xlane.xlu0 %1689
  %1691 = vadd.xlane.f32.xlu0 %v1442
  %v1692 = vpop.xlane.xlu0 %1691
  %1693 = vadd.xlane.f32.xlu0 %v1443
  %v1694 = vpop.xlane.xlu0 %1693
  %1695 = vadd.xlane.f32.xlu0 %v1444
  %v1696 = vpop.xlane.xlu0 %1695
  %1697 = vadd.xlane.f32.xlu0 %v1445
  %v1698 = vpop.xlane.xlu0 %1697
  %1699 = vadd.xlane.f32.xlu0 %v1446
  %v1700 = vpop.xlane.xlu0 %1699
  %1701 = vadd.xlane.f32.xlu0 %v1447
  %v1702 = vpop.xlane.xlu0 %1701
  %1703 = vadd.xlane.f32.xlu0 %v1448
  %v1704 = vpop.xlane.xlu0 %1703
  %v1705 = vlaneseq
  %v1706 = vand.u32 %v1705, 127
  %vm1707 = vcmp.lt.s32.totalorder %v1706, 16
  %v1836 = vlaneseq
  %v1837 = vshrl.u32 %v1836, 7
  %v1838 = vsub.s32 %v1706, %v1837
  %v1839 = vrot.slane %v1450, %v1838
  %v1840 = vadd.s32 %v1706, 4294967288
  %v1841 = vlaneseq
  %v1842 = vshrl.u32 %v1841, 7
  %v1843 = vsub.s32 %v1840, %v1842
  %v1844 = vrot.slane %v1452, %v1843
  %vm1845 = vcmask 130112
  %v1846 = vsel %vm1845, %v1844, %v1839
  %v1847 = vadd.s32 %v1706, 4294967280
  %v1848 = vlaneseq
  %v1849 = vshrl.u32 %v1848, 7
  %v1850 = vsub.s32 %v1847, %v1849
  %v1851 = vrot.slane %v1454, %v1850
  %vm1852 = vcmask 195712
  %v1853 = vsel %vm1852, %v1851, %v1846
  %v1854 = vadd.s32 %v1706, 4294967272
  %v1855 = vlaneseq
  %v1856 = vshrl.u32 %v1855, 7
  %v1857 = vsub.s32 %v1854, %v1856
  %v1858 = vrot.slane %v1456, %v1857
  %vm1859 = vcmask 261312
  %v1860 = vsel %vm1859, %v1858, %v1853
  %v1861 = vadd.s32 %v1706, 4294967264
  %v1862 = vlaneseq
  %v1863 = vshrl.u32 %v1862, 7
  %v1864 = vsub.s32 %v1861, %v1863
  %v1865 = vrot.slane %v1458, %v1864
  %vm1866 = vcmask 326912
  %v1867 = vsel %vm1866, %v1865, %v1860
  %v1868 = vadd.s32 %v1706, 4294967256
  %v1869 = vlaneseq
  %v1870 = vshrl.u32 %v1869, 7
  %v1871 = vsub.s32 %v1868, %v1870
  %v1872 = vrot.slane %v1460, %v1871
  %vm1873 = vcmask 392512
  %v1874 = vsel %vm1873, %v1872, %v1867
  %v1875 = vadd.s32 %v1706, 4294967248
  %v1876 = vlaneseq
  %v1877 = vshrl.u32 %v1876, 7
  %v1878 = vsub.s32 %v1875, %v1877
  %v1879 = vrot.slane %v1462, %v1878
  %vm1880 = vcmask 458112
  %v1881 = vsel %vm1880, %v1879, %v1874
  %v1882 = vadd.s32 %v1706, 4294967240
  %v1883 = vlaneseq
  %v1884 = vshrl.u32 %v1883, 7
  %v1885 = vsub.s32 %v1882, %v1884
  %v1886 = vrot.slane %v1464, %v1885
  %vm1887 = vcmask 523712
  %v1888 = vsel %vm1887, %v1886, %v1881
  %v1889 = vadd.s32 %v1706, 4294967232
  %v1890 = vlaneseq
  %v1891 = vshrl.u32 %v1890, 7
  %v1892 = vsub.s32 %v1889, %v1891
  %v1893 = vrot.slane %v1466, %v1892
  %vm1894 = vcmask 589312
  %v1895 = vsel %vm1894, %v1893, %v1888
  %v1896 = vadd.s32 %v1706, 4294967224
  %v1897 = vlaneseq
  %v1898 = vshrl.u32 %v1897, 7
  %v1899 = vsub.s32 %v1896, %v1898
  %v1900 = vrot.slane %v1468, %v1899
  %vm1901 = vcmask 654912
  %v1902 = vsel %vm1901, %v1900, %v1895
  %v1903 = vadd.s32 %v1706, 4294967216
  %v1904 = vlaneseq
  %v1905 = vshrl.u32 %v1904, 7
  %v1906 = vsub.s32 %v1903, %v1905
  %v1907 = vrot.slane %v1470, %v1906
  %vm1908 = vcmask 720512
  %v1909 = vsel %vm1908, %v1907, %v1902
  %v1910 = vadd.s32 %v1706, 4294967208
  %v1911 = vlaneseq
  %v1912 = vshrl.u32 %v1911, 7
  %v1913 = vsub.s32 %v1910, %v1912
  %v1914 = vrot.slane %v1472, %v1913
  %vm1915 = vcmask 786112
  %v1916 = vsel %vm1915, %v1914, %v1909
  %v1917 = vadd.s32 %v1706, 4294967200
  %v1918 = vlaneseq
  %v1919 = vshrl.u32 %v1918, 7
  %v1920 = vsub.s32 %v1917, %v1919
  %v1921 = vrot.slane %v1474, %v1920
  %vm1922 = vcmask 851712
  %v1923 = vsel %vm1922, %v1921, %v1916
  %v1924 = vadd.s32 %v1706, 4294967192
  %v1925 = vlaneseq
  %v1926 = vshrl.u32 %v1925, 7
  %v1927 = vsub.s32 %v1924, %v1926
  %v1928 = vrot.slane %v1476, %v1927
  %vm1929 = vcmask 917312
  %v1930 = vsel %vm1929, %v1928, %v1923
  %v1931 = vadd.s32 %v1706, 4294967184
  %v1932 = vlaneseq
  %v1933 = vshrl.u32 %v1932, 7
  %v1934 = vsub.s32 %v1931, %v1933
  %v1935 = vrot.slane %v1478, %v1934
  %vm1936 = vcmask 982912
  %v1937 = vsel %vm1936, %v1935, %v1930
  %v1938 = vadd.s32 %v1706, 4294967176
  %v1939 = vlaneseq
  %v1940 = vshrl.u32 %v1939, 7
  %v1941 = vsub.s32 %v1938, %v1940
  %v1942 = vrot.slane %v1480, %v1941
  %vm1943 = vcmask 1048512
  %v1944 = vsel %vm1943, %v1942, %v1937
  %v1945 = vlaneseq
  %v1946 = vshrl.u32 %v1945, 7
  %v1947 = vsub.s32 %v1706, %v1946
  %v1948 = vrot.slane %v1482, %v1947
  %v1949 = vlaneseq
  %v1950 = vshrl.u32 %v1949, 7
  %v1951 = vsub.s32 %v1840, %v1950
  %v1952 = vrot.slane %v1484, %v1951
  %v1953 = vsel %vm1845, %v1952, %v1948
  %v1954 = vlaneseq
  %v1955 = vshrl.u32 %v1954, 7
  %v1956 = vsub.s32 %v1847, %v1955
  %v1957 = vrot.slane %v1486, %v1956
  %v1958 = vsel %vm1852, %v1957, %v1953
  %v1959 = vlaneseq
  %v1960 = vshrl.u32 %v1959, 7
  %v1961 = vsub.s32 %v1854, %v1960
  %v1962 = vrot.slane %v1488, %v1961
  %v1963 = vsel %vm1859, %v1962, %v1958
  %v1964 = vlaneseq
  %v1965 = vshrl.u32 %v1964, 7
  %v1966 = vsub.s32 %v1861, %v1965
  %v1967 = vrot.slane %v1490, %v1966
  %v1968 = vsel %vm1866, %v1967, %v1963
  %v1969 = vlaneseq
  %v1970 = vshrl.u32 %v1969, 7
  %v1971 = vsub.s32 %v1868, %v1970
  %v1972 = vrot.slane %v1492, %v1971
  %v1973 = vsel %vm1873, %v1972, %v1968
  %v1974 = vlaneseq
  %v1975 = vshrl.u32 %v1974, 7
  %v1976 = vsub.s32 %v1875, %v1975
  %v1977 = vrot.slane %v1494, %v1976
  %v1978 = vsel %vm1880, %v1977, %v1973
  %v1979 = vlaneseq
  %v1980 = vshrl.u32 %v1979, 7
  %v1981 = vsub.s32 %v1882, %v1980
  %v1982 = vrot.slane %v1496, %v1981
  %v1983 = vsel %vm1887, %v1982, %v1978
  %v1984 = vlaneseq
  %v1985 = vshrl.u32 %v1984, 7
  %v1986 = vsub.s32 %v1889, %v1985
  %v1987 = vrot.slane %v1498, %v1986
  %v1988 = vsel %vm1894, %v1987, %v1983
  %v1989 = vlaneseq
  %v1990 = vshrl.u32 %v1989, 7
  %v1991 = vsub.s32 %v1896, %v1990
  %v1992 = vrot.slane %v1500, %v1991
  %v1993 = vsel %vm1901, %v1992, %v1988
  %v1994 = vlaneseq
  %v1995 = vshrl.u32 %v1994, 7
  %v1996 = vsub.s32 %v1903, %v1995
  %v1997 = vrot.slane %v1502, %v1996
  %v1998 = vsel %vm1908, %v1997, %v1993
  %v1999 = vlaneseq
  %v2000 = vshrl.u32 %v1999, 7
  %v2001 = vsub.s32 %v1910, %v2000
  %v2002 = vrot.slane %v1504, %v2001
  %v2003 = vsel %vm1915, %v2002, %v1998
  %v2004 = vlaneseq
  %v2005 = vshrl.u32 %v2004, 7
  %v2006 = vsub.s32 %v1917, %v2005
  %v2007 = vrot.slane %v1506, %v2006
  %v2008 = vsel %vm1922, %v2007, %v2003
  %v2009 = vlaneseq
  %v2010 = vshrl.u32 %v2009, 7
  %v2011 = vsub.s32 %v1924, %v2010
  %v2012 = vrot.slane %v1508, %v2011
  %v2013 = vsel %vm1929, %v2012, %v2008
  %v2014 = vlaneseq
  %v2015 = vshrl.u32 %v2014, 7
  %v2016 = vsub.s32 %v1931, %v2015
  %v2017 = vrot.slane %v1510, %v2016
  %v2018 = vsel %vm1936, %v2017, %v2013
  %v2019 = vlaneseq
  %v2020 = vshrl.u32 %v2019, 7
  %v2021 = vsub.s32 %v1938, %v2020
  %v2022 = vrot.slane %v1512, %v2021
  %v2023 = vsel %vm1943, %v2022, %v2018
  %v2024 = vlaneseq
  %v2025 = vshrl.u32 %v2024, 7
  %v2026 = vsub.s32 %v1706, %v2025
  %v2027 = vrot.slane %v1514, %v2026
  %v2028 = vlaneseq
  %v2029 = vshrl.u32 %v2028, 7
  %v2030 = vsub.s32 %v1840, %v2029
  %v2031 = vrot.slane %v1516, %v2030
  %v2032 = vsel %vm1845, %v2031, %v2027
  %v2033 = vlaneseq
  %v2034 = vshrl.u32 %v2033, 7
  %v2035 = vsub.s32 %v1847, %v2034
  %v2036 = vrot.slane %v1518, %v2035
  %v2037 = vsel %vm1852, %v2036, %v2032
  %v2038 = vlaneseq
  %v2039 = vshrl.u32 %v2038, 7
  %v2040 = vsub.s32 %v1854, %v2039
  %v2041 = vrot.slane %v1520, %v2040
  %v2042 = vsel %vm1859, %v2041, %v2037
  %v2043 = vlaneseq
  %v2044 = vshrl.u32 %v2043, 7
  %v2045 = vsub.s32 %v1861, %v2044
  %v2046 = vrot.slane %v1522, %v2045
  %v2047 = vsel %vm1866, %v2046, %v2042
  %v2048 = vlaneseq
  %v2049 = vshrl.u32 %v2048, 7
  %v2050 = vsub.s32 %v1868, %v2049
  %v2051 = vrot.slane %v1524, %v2050
  %v2052 = vsel %vm1873, %v2051, %v2047
  %v2053 = vlaneseq
  %v2054 = vshrl.u32 %v2053, 7
  %v2055 = vsub.s32 %v1875, %v2054
  %v2056 = vrot.slane %v1526, %v2055
  %v2057 = vsel %vm1880, %v2056, %v2052
  %v2058 = vlaneseq
  %v2059 = vshrl.u32 %v2058, 7
  %v2060 = vsub.s32 %v1882, %v2059
  %v2061 = vrot.slane %v1528, %v2060
  %v2062 = vsel %vm1887, %v2061, %v2057
  %v2063 = vlaneseq
  %v2064 = vshrl.u32 %v2063, 7
  %v2065 = vsub.s32 %v1889, %v2064
  %v2066 = vrot.slane %v1530, %v2065
  %v2067 = vsel %vm1894, %v2066, %v2062
  %v2068 = vlaneseq
  %v2069 = vshrl.u32 %v2068, 7
  %v2070 = vsub.s32 %v1896, %v2069
  %v2071 = vrot.slane %v1532, %v2070
  %v2072 = vsel %vm1901, %v2071, %v2067
  %v2073 = vlaneseq
  %v2074 = vshrl.u32 %v2073, 7
  %v2075 = vsub.s32 %v1903, %v2074
  %v2076 = vrot.slane %v1534, %v2075
  %v2077 = vsel %vm1908, %v2076, %v2072
  %v2078 = vlaneseq
  %v2079 = vshrl.u32 %v2078, 7
  %v2080 = vsub.s32 %v1910, %v2079
  %v2081 = vrot.slane %v1536, %v2080
  %v2082 = vsel %vm1915, %v2081, %v2077
  %v2083 = vlaneseq
  %v2084 = vshrl.u32 %v2083, 7
  %v2085 = vsub.s32 %v1917, %v2084
  %v2086 = vrot.slane %v1538, %v2085
  %v2087 = vsel %vm1922, %v2086, %v2082
  %v2088 = vlaneseq
  %v2089 = vshrl.u32 %v2088, 7
  %v2090 = vsub.s32 %v1924, %v2089
  %v2091 = vrot.slane %v1540, %v2090
  %v2092 = vsel %vm1929, %v2091, %v2087
  %v2093 = vlaneseq
  %v2094 = vshrl.u32 %v2093, 7
  %v2095 = vsub.s32 %v1931, %v2094
  %v2096 = vrot.slane %v1542, %v2095
  %v2097 = vsel %vm1936, %v2096, %v2092
  %v2098 = vlaneseq
  %v2099 = vshrl.u32 %v2098, 7
  %v2100 = vsub.s32 %v1938, %v2099
  %v2101 = vrot.slane %v1544, %v2100
  %v2102 = vsel %vm1943, %v2101, %v2097
  %v2103 = vlaneseq
  %v2104 = vshrl.u32 %v2103, 7
  %v2105 = vsub.s32 %v1706, %v2104
  %v2106 = vrot.slane %v1546, %v2105
  %v2107 = vlaneseq
  %v2108 = vshrl.u32 %v2107, 7
  %v2109 = vsub.s32 %v1840, %v2108
  %v2110 = vrot.slane %v1548, %v2109
  %v2111 = vsel %vm1845, %v2110, %v2106
  %v2112 = vlaneseq
  %v2113 = vshrl.u32 %v2112, 7
  %v2114 = vsub.s32 %v1847, %v2113
  %v2115 = vrot.slane %v1550, %v2114
  %v2116 = vsel %vm1852, %v2115, %v2111
  %v2117 = vlaneseq
  %v2118 = vshrl.u32 %v2117, 7
  %v2119 = vsub.s32 %v1854, %v2118
  %v2120 = vrot.slane %v1552, %v2119
  %v2121 = vsel %vm1859, %v2120, %v2116
  %v2122 = vlaneseq
  %v2123 = vshrl.u32 %v2122, 7
  %v2124 = vsub.s32 %v1861, %v2123
  %v2125 = vrot.slane %v1554, %v2124
  %v2126 = vsel %vm1866, %v2125, %v2121
  %v2127 = vlaneseq
  %v2128 = vshrl.u32 %v2127, 7
  %v2129 = vsub.s32 %v1868, %v2128
  %v2130 = vrot.slane %v1556, %v2129
  %v2131 = vsel %vm1873, %v2130, %v2126
  %v2132 = vlaneseq
  %v2133 = vshrl.u32 %v2132, 7
  %v2134 = vsub.s32 %v1875, %v2133
  %v2135 = vrot.slane %v1558, %v2134
  %v2136 = vsel %vm1880, %v2135, %v2131
  %v2137 = vlaneseq
  %v2138 = vshrl.u32 %v2137, 7
  %v2139 = vsub.s32 %v1882, %v2138
  %v2140 = vrot.slane %v1560, %v2139
  %v2141 = vsel %vm1887, %v2140, %v2136
  %v2142 = vlaneseq
  %v2143 = vshrl.u32 %v2142, 7
  %v2144 = vsub.s32 %v1889, %v2143
  %v2145 = vrot.slane %v1562, %v2144
  %v2146 = vsel %vm1894, %v2145, %v2141
  %v2147 = vlaneseq
  %v2148 = vshrl.u32 %v2147, 7
  %v2149 = vsub.s32 %v1896, %v2148
  %v2150 = vrot.slane %v1564, %v2149
  %v2151 = vsel %vm1901, %v2150, %v2146
  %v2152 = vlaneseq
  %v2153 = vshrl.u32 %v2152, 7
  %v2154 = vsub.s32 %v1903, %v2153
  %v2155 = vrot.slane %v1566, %v2154
  %v2156 = vsel %vm1908, %v2155, %v2151
  %v2157 = vlaneseq
  %v2158 = vshrl.u32 %v2157, 7
  %v2159 = vsub.s32 %v1910, %v2158
  %v2160 = vrot.slane %v1568, %v2159
  %v2161 = vsel %vm1915, %v2160, %v2156
  %v2162 = vlaneseq
  %v2163 = vshrl.u32 %v2162, 7
  %v2164 = vsub.s32 %v1917, %v2163
  %v2165 = vrot.slane %v1570, %v2164
  %v2166 = vsel %vm1922, %v2165, %v2161
  %v2167 = vlaneseq
  %v2168 = vshrl.u32 %v2167, 7
  %v2169 = vsub.s32 %v1924, %v2168
  %v2170 = vrot.slane %v1572, %v2169
  %v2171 = vsel %vm1929, %v2170, %v2166
  %v2172 = vlaneseq
  %v2173 = vshrl.u32 %v2172, 7
  %v2174 = vsub.s32 %v1931, %v2173
  %v2175 = vrot.slane %v1574, %v2174
  %v2176 = vsel %vm1936, %v2175, %v2171
  %v2177 = vlaneseq
  %v2178 = vshrl.u32 %v2177, 7
  %v2179 = vsub.s32 %v1938, %v2178
  %v2180 = vrot.slane %v1576, %v2179
  %v2181 = vsel %vm1943, %v2180, %v2176
  %v2182 = vlaneseq
  %v2183 = vshrl.u32 %v2182, 7
  %v2184 = vsub.s32 %v1706, %v2183
  %v2185 = vrot.slane %v1578, %v2184
  %v2186 = vlaneseq
  %v2187 = vshrl.u32 %v2186, 7
  %v2188 = vsub.s32 %v1840, %v2187
  %v2189 = vrot.slane %v1580, %v2188
  %v2190 = vsel %vm1845, %v2189, %v2185
  %v2191 = vlaneseq
  %v2192 = vshrl.u32 %v2191, 7
  %v2193 = vsub.s32 %v1847, %v2192
  %v2194 = vrot.slane %v1582, %v2193
  %v2195 = vsel %vm1852, %v2194, %v2190
  %v2196 = vlaneseq
  %v2197 = vshrl.u32 %v2196, 7
  %v2198 = vsub.s32 %v1854, %v2197
  %v2199 = vrot.slane %v1584, %v2198
  %v2200 = vsel %vm1859, %v2199, %v2195
  %v2201 = vlaneseq
  %v2202 = vshrl.u32 %v2201, 7
  %v2203 = vsub.s32 %v1861, %v2202
  %v2204 = vrot.slane %v1586, %v2203
  %v2205 = vsel %vm1866, %v2204, %v2200
  %v2206 = vlaneseq
  %v2207 = vshrl.u32 %v2206, 7
  %v2208 = vsub.s32 %v1868, %v2207
  %v2209 = vrot.slane %v1588, %v2208
  %v2210 = vsel %vm1873, %v2209, %v2205
  %v2211 = vlaneseq
  %v2212 = vshrl.u32 %v2211, 7
  %v2213 = vsub.s32 %v1875, %v2212
  %v2214 = vrot.slane %v1590, %v2213
  %v2215 = vsel %vm1880, %v2214, %v2210
  %v2216 = vlaneseq
  %v2217 = vshrl.u32 %v2216, 7
  %v2218 = vsub.s32 %v1882, %v2217
  %v2219 = vrot.slane %v1592, %v2218
  %v2220 = vsel %vm1887, %v2219, %v2215
  %v2221 = vlaneseq
  %v2222 = vshrl.u32 %v2221, 7
  %v2223 = vsub.s32 %v1889, %v2222
  %v2224 = vrot.slane %v1594, %v2223
  %v2225 = vsel %vm1894, %v2224, %v2220
  %v2226 = vlaneseq
  %v2227 = vshrl.u32 %v2226, 7
  %v2228 = vsub.s32 %v1896, %v2227
  %v2229 = vrot.slane %v1596, %v2228
  %v2230 = vsel %vm1901, %v2229, %v2225
  %v2231 = vlaneseq
  %v2232 = vshrl.u32 %v2231, 7
  %v2233 = vsub.s32 %v1903, %v2232
  %v2234 = vrot.slane %v1598, %v2233
  %v2235 = vsel %vm1908, %v2234, %v2230
  %v2236 = vlaneseq
  %v2237 = vshrl.u32 %v2236, 7
  %v2238 = vsub.s32 %v1910, %v2237
  %v2239 = vrot.slane %v1600, %v2238
  %v2240 = vsel %vm1915, %v2239, %v2235
  %v2241 = vlaneseq
  %v2242 = vshrl.u32 %v2241, 7
  %v2243 = vsub.s32 %v1917, %v2242
  %v2244 = vrot.slane %v1602, %v2243
  %v2245 = vsel %vm1922, %v2244, %v2240
  %v2246 = vlaneseq
  %v2247 = vshrl.u32 %v2246, 7
  %v2248 = vsub.s32 %v1924, %v2247
  %v2249 = vrot.slane %v1604, %v2248
  %v2250 = vsel %vm1929, %v2249, %v2245
  %v2251 = vlaneseq
  %v2252 = vshrl.u32 %v2251, 7
  %v2253 = vsub.s32 %v1931, %v2252
  %v2254 = vrot.slane %v1606, %v2253
  %v2255 = vsel %vm1936, %v2254, %v2250
  %v2256 = vlaneseq
  %v2257 = vshrl.u32 %v2256, 7
  %v2258 = vsub.s32 %v1938, %v2257
  %v2259 = vrot.slane %v1608, %v2258
  %v2260 = vsel %vm1943, %v2259, %v2255
  %v2261 = vlaneseq
  %v2262 = vshrl.u32 %v2261, 7
  %v2263 = vsub.s32 %v1706, %v2262
  %v2264 = vrot.slane %v1610, %v2263
  %v2265 = vlaneseq
  %v2266 = vshrl.u32 %v2265, 7
  %v2267 = vsub.s32 %v1840, %v2266
  %v2268 = vrot.slane %v1612, %v2267
  %v2269 = vsel %vm1845, %v2268, %v2264
  %v2270 = vlaneseq
  %v2271 = vshrl.u32 %v2270, 7
  %v2272 = vsub.s32 %v1847, %v2271
  %v2273 = vrot.slane %v1614, %v2272
  %v2274 = vsel %vm1852, %v2273, %v2269
  %v2275 = vlaneseq
  %v2276 = vshrl.u32 %v2275, 7
  %v2277 = vsub.s32 %v1854, %v2276
  %v2278 = vrot.slane %v1616, %v2277
  %v2279 = vsel %vm1859, %v2278, %v2274
  %v2280 = vlaneseq
  %v2281 = vshrl.u32 %v2280, 7
  %v2282 = vsub.s32 %v1861, %v2281
  %v2283 = vrot.slane %v1618, %v2282
  %v2284 = vsel %vm1866, %v2283, %v2279
  %v2285 = vlaneseq
  %v2286 = vshrl.u32 %v2285, 7
  %v2287 = vsub.s32 %v1868, %v2286
  %v2288 = vrot.slane %v1620, %v2287
  %v2289 = vsel %vm1873, %v2288, %v2284
  %v2290 = vlaneseq
  %v2291 = vshrl.u32 %v2290, 7
  %v2292 = vsub.s32 %v1875, %v2291
  %v2293 = vrot.slane %v1622, %v2292
  %v2294 = vsel %vm1880, %v2293, %v2289
  %v2295 = vlaneseq
  %v2296 = vshrl.u32 %v2295, 7
  %v2297 = vsub.s32 %v1882, %v2296
  %v2298 = vrot.slane %v1624, %v2297
  %v2299 = vsel %vm1887, %v2298, %v2294
  %v2300 = vlaneseq
  %v2301 = vshrl.u32 %v2300, 7
  %v2302 = vsub.s32 %v1889, %v2301
  %v2303 = vrot.slane %v1626, %v2302
  %v2304 = vsel %vm1894, %v2303, %v2299
  %v2305 = vlaneseq
  %v2306 = vshrl.u32 %v2305, 7
  %v2307 = vsub.s32 %v1896, %v2306
  %v2308 = vrot.slane %v1628, %v2307
  %v2309 = vsel %vm1901, %v2308, %v2304
  %v2310 = vlaneseq
  %v2311 = vshrl.u32 %v2310, 7
  %v2312 = vsub.s32 %v1903, %v2311
  %v2313 = vrot.slane %v1630, %v2312
  %v2314 = vsel %vm1908, %v2313, %v2309
  %v2315 = vlaneseq
  %v2316 = vshrl.u32 %v2315, 7
  %v2317 = vsub.s32 %v1910, %v2316
  %v2318 = vrot.slane %v1632, %v2317
  %v2319 = vsel %vm1915, %v2318, %v2314
  %v2320 = vlaneseq
  %v2321 = vshrl.u32 %v2320, 7
  %v2322 = vsub.s32 %v1917, %v2321
  %v2323 = vrot.slane %v1634, %v2322
  %v2324 = vsel %vm1922, %v2323, %v2319
  %v2325 = vlaneseq
  %v2326 = vshrl.u32 %v2325, 7
  %v2327 = vsub.s32 %v1924, %v2326
  %v2328 = vrot.slane %v1636, %v2327
  %v2329 = vsel %vm1929, %v2328, %v2324
  %v2330 = vlaneseq
  %v2331 = vshrl.u32 %v2330, 7
  %v2332 = vsub.s32 %v1931, %v2331
  %v2333 = vrot.slane %v1638, %v2332
  %v2334 = vsel %vm1936, %v2333, %v2329
  %v2335 = vlaneseq
  %v2336 = vshrl.u32 %v2335, 7
  %v2337 = vsub.s32 %v1938, %v2336
  %v2338 = vrot.slane %v1640, %v2337
  %v2339 = vsel %vm1943, %v2338, %v2334
  %v2340 = vlaneseq
  %v2341 = vshrl.u32 %v2340, 7
  %v2342 = vsub.s32 %v1706, %v2341
  %v2343 = vrot.slane %v1642, %v2342
  %v2344 = vlaneseq
  %v2345 = vshrl.u32 %v2344, 7
  %v2346 = vsub.s32 %v1840, %v2345
  %v2347 = vrot.slane %v1644, %v2346
  %v2348 = vsel %vm1845, %v2347, %v2343
  %v2349 = vlaneseq
  %v2350 = vshrl.u32 %v2349, 7
  %v2351 = vsub.s32 %v1847, %v2350
  %v2352 = vrot.slane %v1646, %v2351
  %v2353 = vsel %vm1852, %v2352, %v2348
  %v2354 = vlaneseq
  %v2355 = vshrl.u32 %v2354, 7
  %v2356 = vsub.s32 %v1854, %v2355
  %v2357 = vrot.slane %v1648, %v2356
  %v2358 = vsel %vm1859, %v2357, %v2353
  %v2359 = vlaneseq
  %v2360 = vshrl.u32 %v2359, 7
  %v2361 = vsub.s32 %v1861, %v2360
  %v2362 = vrot.slane %v1650, %v2361
  %v2363 = vsel %vm1866, %v2362, %v2358
  %v2364 = vlaneseq
  %v2365 = vshrl.u32 %v2364, 7
  %v2366 = vsub.s32 %v1868, %v2365
  %v2367 = vrot.slane %v1652, %v2366
  %v2368 = vsel %vm1873, %v2367, %v2363
  %v2369 = vlaneseq
  %v2370 = vshrl.u32 %v2369, 7
  %v2371 = vsub.s32 %v1875, %v2370
  %v2372 = vrot.slane %v1654, %v2371
  %v2373 = vsel %vm1880, %v2372, %v2368
  %v2374 = vlaneseq
  %v2375 = vshrl.u32 %v2374, 7
  %v2376 = vsub.s32 %v1882, %v2375
  %v2377 = vrot.slane %v1656, %v2376
  %v2378 = vsel %vm1887, %v2377, %v2373
  %v2379 = vlaneseq
  %v2380 = vshrl.u32 %v2379, 7
  %v2381 = vsub.s32 %v1889, %v2380
  %v2382 = vrot.slane %v1658, %v2381
  %v2383 = vsel %vm1894, %v2382, %v2378
  %v2384 = vlaneseq
  %v2385 = vshrl.u32 %v2384, 7
  %v2386 = vsub.s32 %v1896, %v2385
  %v2387 = vrot.slane %v1660, %v2386
  %v2388 = vsel %vm1901, %v2387, %v2383
  %v2389 = vlaneseq
  %v2390 = vshrl.u32 %v2389, 7
  %v2391 = vsub.s32 %v1903, %v2390
  %v2392 = vrot.slane %v1662, %v2391
  %v2393 = vsel %vm1908, %v2392, %v2388
  %v2394 = vlaneseq
  %v2395 = vshrl.u32 %v2394, 7
  %v2396 = vsub.s32 %v1910, %v2395
  %v2397 = vrot.slane %v1664, %v2396
  %v2398 = vsel %vm1915, %v2397, %v2393
  %v2399 = vlaneseq
  %v2400 = vshrl.u32 %v2399, 7
  %v2401 = vsub.s32 %v1917, %v2400
  %v2402 = vrot.slane %v1666, %v2401
  %v2403 = vsel %vm1922, %v2402, %v2398
  %v2404 = vlaneseq
  %v2405 = vshrl.u32 %v2404, 7
  %v2406 = vsub.s32 %v1924, %v2405
  %v2407 = vrot.slane %v1668, %v2406
  %v2408 = vsel %vm1929, %v2407, %v2403
  %v2409 = vlaneseq
  %v2410 = vshrl.u32 %v2409, 7
  %v2411 = vsub.s32 %v1931, %v2410
  %v2412 = vrot.slane %v1670, %v2411
  %v2413 = vsel %vm1936, %v2412, %v2408
  %v2414 = vlaneseq
  %v2415 = vshrl.u32 %v2414, 7
  %v2416 = vsub.s32 %v1938, %v2415
  %v2417 = vrot.slane %v1672, %v2416
  %v2418 = vsel %vm1943, %v2417, %v2413
  %v2419 = vlaneseq
  %v2420 = vshrl.u32 %v2419, 7
  %v2421 = vsub.s32 %v1706, %v2420
  %v2422 = vrot.slane %v1674, %v2421
  %v2423 = vlaneseq
  %v2424 = vshrl.u32 %v2423, 7
  %v2425 = vsub.s32 %v1840, %v2424
  %v2426 = vrot.slane %v1676, %v2425
  %v2427 = vsel %vm1845, %v2426, %v2422
  %v2428 = vlaneseq
  %v2429 = vshrl.u32 %v2428, 7
  %v2430 = vsub.s32 %v1847, %v2429
  %v2431 = vrot.slane %v1678, %v2430
  %v2432 = vsel %vm1852, %v2431, %v2427
  %v2433 = vlaneseq
  %v2434 = vshrl.u32 %v2433, 7
  %v2435 = vsub.s32 %v1854, %v2434
  %v2436 = vrot.slane %v1680, %v2435
  %v2437 = vsel %vm1859, %v2436, %v2432
  %v2438 = vlaneseq
  %v2439 = vshrl.u32 %v2438, 7
  %v2440 = vsub.s32 %v1861, %v2439
  %v2441 = vrot.slane %v1682, %v2440
  %v2442 = vsel %vm1866, %v2441, %v2437
  %v2443 = vlaneseq
  %v2444 = vshrl.u32 %v2443, 7
  %v2445 = vsub.s32 %v1868, %v2444
  %v2446 = vrot.slane %v1684, %v2445
  %v2447 = vsel %vm1873, %v2446, %v2442
  %v2448 = vlaneseq
  %v2449 = vshrl.u32 %v2448, 7
  %v2450 = vsub.s32 %v1875, %v2449
  %v2451 = vrot.slane %v1686, %v2450
  %v2452 = vsel %vm1880, %v2451, %v2447
  %v2453 = vlaneseq
  %v2454 = vshrl.u32 %v2453, 7
  %v2455 = vsub.s32 %v1882, %v2454
  %v2456 = vrot.slane %v1688, %v2455
  %v2457 = vsel %vm1887, %v2456, %v2452
  %v2458 = vlaneseq
  %v2459 = vshrl.u32 %v2458, 7
  %v2460 = vsub.s32 %v1889, %v2459
  %v2461 = vrot.slane %v1690, %v2460
  %v2462 = vsel %vm1894, %v2461, %v2457
  %v2463 = vlaneseq
  %v2464 = vshrl.u32 %v2463, 7
  %v2465 = vsub.s32 %v1896, %v2464
  %v2466 = vrot.slane %v1692, %v2465
  %v2467 = vsel %vm1901, %v2466, %v2462
  %v2468 = vlaneseq
  %v2469 = vshrl.u32 %v2468, 7
  %v2470 = vsub.s32 %v1903, %v2469
  %v2471 = vrot.slane %v1694, %v2470
  %v2472 = vsel %vm1908, %v2471, %v2467
  %v2473 = vlaneseq
  %v2474 = vshrl.u32 %v2473, 7
  %v2475 = vsub.s32 %v1910, %v2474
  %v2476 = vrot.slane %v1696, %v2475
  %v2477 = vsel %vm1915, %v2476, %v2472
  %v2478 = vlaneseq
  %v2479 = vshrl.u32 %v2478, 7
  %v2480 = vsub.s32 %v1917, %v2479
  %v2481 = vrot.slane %v1698, %v2480
  %v2482 = vsel %vm1922, %v2481, %v2477
  %v2483 = vlaneseq
  %v2484 = vshrl.u32 %v2483, 7
  %v2485 = vsub.s32 %v1924, %v2484
  %v2486 = vrot.slane %v1700, %v2485
  %v2487 = vsel %vm1929, %v2486, %v2482
  %v2488 = vlaneseq
  %v2489 = vshrl.u32 %v2488, 7
  %v2490 = vsub.s32 %v1931, %v2489
  %v2491 = vrot.slane %v1702, %v2490
  %v2492 = vsel %vm1936, %v2491, %v2487
  %v2493 = vlaneseq
  %v2494 = vshrl.u32 %v2493, 7
  %v2495 = vsub.s32 %v1938, %v2494
  %v2496 = vrot.slane %v1704, %v2495
  %v2497 = vsel %vm1943, %v2496, %v2492
  %vm2498 = vcmask 1041409
  %v2499 = vsel %vm2498, %v2023, %v1944
  %vm2500 = vcmask 1042434
  %v2501 = vsel %vm2500, %v2102, %v2499
  %vm2502 = vcmask 1043459
  %v2503 = vsel %vm2502, %v2181, %v2501
  %vm2504 = vcmask 1044484
  %v2505 = vsel %vm2504, %v2260, %v2503
  %vm2506 = vcmask 1045509
  %v2507 = vsel %vm2506, %v2339, %v2505
  %vm2508 = vcmask 1046534
  %v2509 = vsel %vm2508, %v2418, %v2507
  %vm2510 = vcmask 1047559
  %v2511 = vsel %vm2510, %v2497, %v2509
  %v2513 = vsel %vm1707, %v2511, -inf
  %2514 = vmax.xlane.f32.xlu0 %v2513
  %v2515 = vpop.xlane.xlu0 %2514
  %v2516 = vsub.f32 %v2513, %v2515
  %v2517 = vmul.f32 %v2516, 1.442695
  %v2518 = vpow.pop %v2517
  %2519 = vadd.xlane.f32.xlu0 %v2518
  %v2520 = vpop.xlane.xlu0 %2519
  %v2521 = vrcp.pop %v2520
  %v2522 = vmul.f32 %v2518, %v2521
  %2523 = vst [vmem:[%s7] sm:$0xff] %v2522
  %v2525 = vcombine.high %v2522, %v2522
  %v2527 = vunpack.c.l.s4 1966171168
  %v2528 = vunpack.c.0.s8 %v2527
  %v2529 = vlaneseq
  %v2530 = vshrl.u32 %v2529, 7
  %v2531 = vsub.s32 %v2528, %v2530
  %v2532 = vrot.slane %v2522, %v2531
  %v2534 = vunpack.c.l.s4 1966171168
  %v2535 = vunpack.c.0.s8 %v2534
  %v2536 = vlaneseq
  %v2537 = vshrl.u32 %v2536, 7
  %v2538 = vsub.s32 %v2535, %v2537
  %v2539 = vrot.slane %v2525, %v2538
  %v2540 = vcombine.high %v2532, %v2532
  %v2541 = vcombine.high %v2539, %v2539
  %v2543 = vunpack.c.l.s4 1966171168
  %v2544 = vunpack.c.0.s8 %v2543
  %v2545 = vlaneseq
  %v2546 = vshrl.u32 %v2545, 7
  %v2547 = vsub.s32 %v2544, %v2546
  %v2548 = vrot.slane %v2532, %v2547
  %v2550 = vunpack.c.l.s4 1966171168
  %v2551 = vunpack.c.0.s8 %v2550
  %v2552 = vlaneseq
  %v2553 = vshrl.u32 %v2552, 7
  %v2554 = vsub.s32 %v2551, %v2553
  %v2555 = vrot.slane %v2539, %v2554
  %v2557 = vunpack.c.l.s4 1966171168
  %v2558 = vunpack.c.0.s8 %v2557
  %v2559 = vlaneseq
  %v2560 = vshrl.u32 %v2559, 7
  %v2561 = vsub.s32 %v2558, %v2560
  %v2562 = vrot.slane %v2540, %v2561
  %v2564 = vunpack.c.l.s4 1966171168
  %v2565 = vunpack.c.0.s8 %v2564
  %v2566 = vlaneseq
  %v2567 = vshrl.u32 %v2566, 7
  %v2568 = vsub.s32 %v2565, %v2567
  %v2569 = vrot.slane %v2541, %v2568
  %v2570 = vcombine.high %v2548, %v2548
  %v2571 = vcombine.high %v2555, %v2555
  %v2572 = vcombine.high %v2562, %v2562
  %v2573 = vcombine.high %v2569, %v2569
  %2582 = vmatprep.subr.mxu0 0.0
  %2583 = vmatpush1.msra.mxu0 %v40
  %2584 = vmatprep.subr.mxu0 0.0
  %2585 = vmatpush1.msra.mxu0 %v39
  %2586 = vmatprep.subr.mxu0 0.0
  %2587 = vmatpush1.msra.mxu0 %v38
  %2588 = vmatprep.subr.mxu0 0.0
  %2589 = vmatpush1.msra.mxu0 %v37
  %2590 = vmatprep.subr.mxu0 0.0
  %2591 = vmatpush1.msra.mxu0 %v36
  %2592 = vmatprep.subr.mxu0 0.0
  %2593 = vmatpush1.msra.mxu0 %v35
  %2594 = vmatprep.subr.mxu0 0.0
  %2595 = vmatpush1.msra.mxu0 %v34
  %2596 = vmatprep.subr.mxu0 0.0
  %2597 = vmatpush1.msra.mxu0 %v33
  %2598 = vmatprep.subr.mxu0 0.0
  %2599 = vmatpush1.msra.mxu0 %v32
  %2600 = vmatprep.subr.mxu0 0.0
  %2601 = vmatpush1.msra.mxu0 %v31
  %2602 = vmatprep.subr.mxu0 0.0
  %2603 = vmatpush1.msra.mxu0 %v30
  %2604 = vmatprep.subr.mxu0 0.0
  %2605 = vmatpush1.msra.mxu0 %v29
  %2606 = vmatprep.subr.mxu0 0.0
  %2607 = vmatpush1.msra.mxu0 %v28
  %2608 = vmatprep.subr.mxu0 0.0
  %2609 = vmatpush1.msra.mxu0 %v27
  %2610 = vmatprep.subr.mxu0 0.0
  %2611 = vmatpush1.msra.mxu0 %v26
  %2612 = vmatprep.subr.mxu0 0.0
  %2613 = vmatpush1.msra.mxu0 %v25
  %2614 = vmatprep.subr.mxu0 0.0
  %2615 = vmatpush2.msra.mxu0 0.0
  %2616 = vmatprep.subr.mxu0 0.0
  %2617 = vmatpush2.msra.mxu0 0.0
  %2618 = vmatprep.subr.mxu0 0.0
  %2619 = vmatpush2.msra.mxu0 0.0
  %2620 = vmatprep.subr.mxu0 0.0
  %2621 = vmatpush2.msra.mxu0 0.0
  %2622 = vmatprep.subr.mxu0 0.0
  %2623 = vmatpush2.msra.mxu0 0.0
  %2624 = vmatprep.subr.mxu0 0.0
  %2625 = vmatpush2.msra.mxu0 0.0
  %2626 = vmatprep.subr.mxu0 0.0
  %2627 = vmatpush2.msra.mxu0 0.0
  %2628 = vmatprep.subr.mxu0 0.0
  %2629 = vmatpush2.msra.mxu0 0.0
  %2630 = vmatprep.subr.mxu0 0.0
  %2631 = vmatpush2.msra.mxu0 0.0
  %2632 = vmatprep.subr.mxu0 0.0
  %2633 = vmatpush2.msra.mxu0 0.0
  %2634 = vmatprep.subr.mxu0 0.0
  %2635 = vmatpush2.msra.mxu0 0.0
  %2636 = vmatprep.subr.mxu0 0.0
  %2637 = vmatpush2.msra.mxu0 0.0
  %2638 = vmatprep.subr.mxu0 0.0
  %2639 = vmatpush2.msra.mxu0 0.0
  %2640 = vmatprep.subr.mxu0 0.0
  %2641 = vmatpush2.msra.mxu0 0.0
  %2642 = vmatprep.subr.mxu0 0.0
  %2643 = vmatpush2.msra.mxu0 0.0
  %2644 = vmatprep.subr.mxu0 0.0
  %2645 = vmatpush2.msra.mxu0 0.0
  %2646 = vmatprep.mubr.f32.mxu0 0.0
  %2647 = vmatmul.mubr.f32.gmra.mxu0 %v2548
  %v2648 = vpop.f32.mrf.mxu0
  %v2649 = vadd.f32 0.0, %v2648
  %v2650 = vpop.f32.mrf.mxu0
  %2651 = vdwg.mxu0
  %2652 = vmatprep.subr.mxu0 0.0
  %2653 = vmatpush1.msra.mxu0 %v56
  %2654 = vmatprep.subr.mxu0 0.0
  %2655 = vmatpush1.msra.mxu0 %v55
  %2656 = vmatprep.subr.mxu0 0.0
  %2657 = vmatpush1.msra.mxu0 %v54
  %2658 = vmatprep.subr.mxu0 0.0
  %2659 = vmatpush1.msra.mxu0 %v53
  %2660 = vmatprep.subr.mxu0 0.0
  %2661 = vmatpush1.msra.mxu0 %v52
  %2662 = vmatprep.subr.mxu0 0.0
  %2663 = vmatpush1.msra.mxu0 %v51
  %2664 = vmatprep.subr.mxu0 0.0
  %2665 = vmatpush1.msra.mxu0 %v50
  %2666 = vmatprep.subr.mxu0 0.0
  %2667 = vmatpush1.msra.mxu0 %v49
  %2668 = vmatprep.subr.mxu0 0.0
  %2669 = vmatpush1.msra.mxu0 %v48
  %2670 = vmatprep.subr.mxu0 0.0
  %2671 = vmatpush1.msra.mxu0 %v47
  %2672 = vmatprep.subr.mxu0 0.0
  %2673 = vmatpush1.msra.mxu0 %v46
  %2674 = vmatprep.subr.mxu0 0.0
  %2675 = vmatpush1.msra.mxu0 %v45
  %2676 = vmatprep.subr.mxu0 0.0
  %2677 = vmatpush1.msra.mxu0 %v44
  %2678 = vmatprep.subr.mxu0 0.0
  %2679 = vmatpush1.msra.mxu0 %v43
  %2680 = vmatprep.subr.mxu0 0.0
  %2681 = vmatpush1.msra.mxu0 %v42
  %2682 = vmatprep.subr.mxu0 0.0
  %2683 = vmatpush1.msra.mxu0 %v41
  %2684 = vmatprep.subr.mxu0 0.0
  %2685 = vmatpush2.msra.mxu0 0.0
  %2686 = vmatprep.subr.mxu0 0.0
  %2687 = vmatpush2.msra.mxu0 0.0
  %2688 = vmatprep.subr.mxu0 0.0
  %2689 = vmatpush2.msra.mxu0 0.0
  %2690 = vmatprep.subr.mxu0 0.0
  %2691 = vmatpush2.msra.mxu0 0.0
  %2692 = vmatprep.subr.mxu0 0.0
  %2693 = vmatpush2.msra.mxu0 0.0
  %2694 = vmatprep.subr.mxu0 0.0
  %2695 = vmatpush2.msra.mxu0 0.0
  %2696 = vmatprep.subr.mxu0 0.0
  %2697 = vmatpush2.msra.mxu0 0.0
  %2698 = vmatprep.subr.mxu0 0.0
  %2699 = vmatpush2.msra.mxu0 0.0
  %2700 = vmatprep.subr.mxu0 0.0
  %2701 = vmatpush2.msra.mxu0 0.0
  %2702 = vmatprep.subr.mxu0 0.0
  %2703 = vmatpush2.msra.mxu0 0.0
  %2704 = vmatprep.subr.mxu0 0.0
  %2705 = vmatpush2.msra.mxu0 0.0
  %2706 = vmatprep.subr.mxu0 0.0
  %2707 = vmatpush2.msra.mxu0 0.0
  %2708 = vmatprep.subr.mxu0 0.0
  %2709 = vmatpush2.msra.mxu0 0.0
  %2710 = vmatprep.subr.mxu0 0.0
  %2711 = vmatpush2.msra.mxu0 0.0
  %2712 = vmatprep.subr.mxu0 0.0
  %2713 = vmatpush2.msra.mxu0 0.0
  %2714 = vmatprep.subr.mxu0 0.0
  %2715 = vmatpush2.msra.mxu0 0.0
  %2716 = vmatprep.mubr.f32.mxu0 0.0
  %2717 = vmatmul.mubr.f32.gmra.mxu0 %v2562
  %v2718 = vpop.f32.mrf.mxu0
  %v2719 = vadd.f32 0.0, %v2718
  %v2720 = vpop.f32.mrf.mxu0
  %2721 = vdwg.mxu0
  %2722 = vmatprep.subr.mxu0 0.0
  %2723 = vmatpush1.msra.mxu0 %v72
  %2724 = vmatprep.subr.mxu0 0.0
  %2725 = vmatpush1.msra.mxu0 %v71
  %2726 = vmatprep.subr.mxu0 0.0
  %2727 = vmatpush1.msra.mxu0 %v70
  %2728 = vmatprep.subr.mxu0 0.0
  %2729 = vmatpush1.msra.mxu0 %v69
  %2730 = vmatprep.subr.mxu0 0.0
  %2731 = vmatpush1.msra.mxu0 %v68
  %2732 = vmatprep.subr.mxu0 0.0
  %2733 = vmatpush1.msra.mxu0 %v67
  %2734 = vmatprep.subr.mxu0 0.0
  %2735 = vmatpush1.msra.mxu0 %v66
  %2736 = vmatprep.subr.mxu0 0.0
  %2737 = vmatpush1.msra.mxu0 %v65
  %2738 = vmatprep.subr.mxu0 0.0
  %2739 = vmatpush1.msra.mxu0 %v64
  %2740 = vmatprep.subr.mxu0 0.0
  %2741 = vmatpush1.msra.mxu0 %v63
  %2742 = vmatprep.subr.mxu0 0.0
  %2743 = vmatpush1.msra.mxu0 %v62
  %2744 = vmatprep.subr.mxu0 0.0
  %2745 = vmatpush1.msra.mxu0 %v61
  %2746 = vmatprep.subr.mxu0 0.0
  %2747 = vmatpush1.msra.mxu0 %v60
  %2748 = vmatprep.subr.mxu0 0.0
  %2749 = vmatpush1.msra.mxu0 %v59
  %2750 = vmatprep.subr.mxu0 0.0
  %2751 = vmatpush1.msra.mxu0 %v58
  %2752 = vmatprep.subr.mxu0 0.0
  %2753 = vmatpush1.msra.mxu0 %v57
  %2754 = vmatprep.subr.mxu0 0.0
  %2755 = vmatpush2.msra.mxu0 0.0
  %2756 = vmatprep.subr.mxu0 0.0
  %2757 = vmatpush2.msra.mxu0 0.0
  %2758 = vmatprep.subr.mxu0 0.0
  %2759 = vmatpush2.msra.mxu0 0.0
  %2760 = vmatprep.subr.mxu0 0.0
  %2761 = vmatpush2.msra.mxu0 0.0
  %2762 = vmatprep.subr.mxu0 0.0
  %2763 = vmatpush2.msra.mxu0 0.0
  %2764 = vmatprep.subr.mxu0 0.0
  %2765 = vmatpush2.msra.mxu0 0.0
  %2766 = vmatprep.subr.mxu0 0.0
  %2767 = vmatpush2.msra.mxu0 0.0
  %2768 = vmatprep.subr.mxu0 0.0
  %2769 = vmatpush2.msra.mxu0 0.0
  %2770 = vmatprep.subr.mxu0 0.0
  %2771 = vmatpush2.msra.mxu0 0.0
  %2772 = vmatprep.subr.mxu0 0.0
  %2773 = vmatpush2.msra.mxu0 0.0
  %2774 = vmatprep.subr.mxu0 0.0
  %2775 = vmatpush2.msra.mxu0 0.0
  %2776 = vmatprep.subr.mxu0 0.0
  %2777 = vmatpush2.msra.mxu0 0.0
  %2778 = vmatprep.subr.mxu0 0.0
  %2779 = vmatpush2.msra.mxu0 0.0
  %2780 = vmatprep.subr.mxu0 0.0
  %2781 = vmatpush2.msra.mxu0 0.0
  %2782 = vmatprep.subr.mxu0 0.0
  %2783 = vmatpush2.msra.mxu0 0.0
  %2784 = vmatprep.subr.mxu0 0.0
  %2785 = vmatpush2.msra.mxu0 0.0
  %2786 = vmatprep.mubr.f32.mxu0 0.0
  %2787 = vmatmul.mubr.f32.gmra.mxu0 %v2570
  %v2788 = vpop.f32.mrf.mxu0
  %v2789 = vadd.f32 0.0, %v2788
  %v2790 = vpop.f32.mrf.mxu0
  %2791 = vdwg.mxu0
  %2792 = vmatprep.subr.mxu0 0.0
  %2793 = vmatpush1.msra.mxu0 %v88
  %2794 = vmatprep.subr.mxu0 0.0
  %2795 = vmatpush1.msra.mxu0 %v87
  %2796 = vmatprep.subr.mxu0 0.0
  %2797 = vmatpush1.msra.mxu0 %v86
  %2798 = vmatprep.subr.mxu0 0.0
  %2799 = vmatpush1.msra.mxu0 %v85
  %2800 = vmatprep.subr.mxu0 0.0
  %2801 = vmatpush1.msra.mxu0 %v84
  %2802 = vmatprep.subr.mxu0 0.0
  %2803 = vmatpush1.msra.mxu0 %v83
  %2804 = vmatprep.subr.mxu0 0.0
  %2805 = vmatpush1.msra.mxu0 %v82
  %2806 = vmatprep.subr.mxu0 0.0
  %2807 = vmatpush1.msra.mxu0 %v81
  %2808 = vmatprep.subr.mxu0 0.0
  %2809 = vmatpush1.msra.mxu0 %v80
  %2810 = vmatprep.subr.mxu0 0.0
  %2811 = vmatpush1.msra.mxu0 %v79
  %2812 = vmatprep.subr.mxu0 0.0
  %2813 = vmatpush1.msra.mxu0 %v78
  %2814 = vmatprep.subr.mxu0 0.0
  %2815 = vmatpush1.msra.mxu0 %v77
  %2816 = vmatprep.subr.mxu0 0.0
  %2817 = vmatpush1.msra.mxu0 %v76
  %2818 = vmatprep.subr.mxu0 0.0
  %2819 = vmatpush1.msra.mxu0 %v75
  %2820 = vmatprep.subr.mxu0 0.0
  %2821 = vmatpush1.msra.mxu0 %v74
  %2822 = vmatprep.subr.mxu0 0.0
  %2823 = vmatpush1.msra.mxu0 %v73
  %2824 = vmatprep.subr.mxu0 0.0
  %2825 = vmatpush2.msra.mxu0 0.0
  %2826 = vmatprep.subr.mxu0 0.0
  %2827 = vmatpush2.msra.mxu0 0.0
  %2828 = vmatprep.subr.mxu0 0.0
  %2829 = vmatpush2.msra.mxu0 0.0
  %2830 = vmatprep.subr.mxu0 0.0
  %2831 = vmatpush2.msra.mxu0 0.0
  %2832 = vmatprep.subr.mxu0 0.0
  %2833 = vmatpush2.msra.mxu0 0.0
  %2834 = vmatprep.subr.mxu0 0.0
  %2835 = vmatpush2.msra.mxu0 0.0
  %2836 = vmatprep.subr.mxu0 0.0
  %2837 = vmatpush2.msra.mxu0 0.0
  %2838 = vmatprep.subr.mxu0 0.0
  %2839 = vmatpush2.msra.mxu0 0.0
  %2840 = vmatprep.subr.mxu0 0.0
  %2841 = vmatpush2.msra.mxu0 0.0
  %2842 = vmatprep.subr.mxu0 0.0
  %2843 = vmatpush2.msra.mxu0 0.0
  %2844 = vmatprep.subr.mxu0 0.0
  %2845 = vmatpush2.msra.mxu0 0.0
  %2846 = vmatprep.subr.mxu0 0.0
  %2847 = vmatpush2.msra.mxu0 0.0
  %2848 = vmatprep.subr.mxu0 0.0
  %2849 = vmatpush2.msra.mxu0 0.0
  %2850 = vmatprep.subr.mxu0 0.0
  %2851 = vmatpush2.msra.mxu0 0.0
  %2852 = vmatprep.subr.mxu0 0.0
  %2853 = vmatpush2.msra.mxu0 0.0
  %2854 = vmatprep.subr.mxu0 0.0
  %2855 = vmatpush2.msra.mxu0 0.0
  %2856 = vmatprep.mubr.f32.mxu0 0.0
  %2857 = vmatmul.mubr.f32.gmra.mxu0 %v2572
  %v2858 = vpop.f32.mrf.mxu0
  %v2859 = vadd.f32 0.0, %v2858
  %v2860 = vpop.f32.mrf.mxu0
  %2861 = vdwg.mxu0
  %2862 = vmatprep.subr.mxu0 0.0
  %2863 = vmatpush1.msra.mxu0 %v104
  %2864 = vmatprep.subr.mxu0 0.0
  %2865 = vmatpush1.msra.mxu0 %v103
  %2866 = vmatprep.subr.mxu0 0.0
  %2867 = vmatpush1.msra.mxu0 %v102
  %2868 = vmatprep.subr.mxu0 0.0
  %2869 = vmatpush1.msra.mxu0 %v101
  %2870 = vmatprep.subr.mxu0 0.0
  %2871 = vmatpush1.msra.mxu0 %v100
  %2872 = vmatprep.subr.mxu0 0.0
  %2873 = vmatpush1.msra.mxu0 %v99
  %2874 = vmatprep.subr.mxu0 0.0
  %2875 = vmatpush1.msra.mxu0 %v98
  %2876 = vmatprep.subr.mxu0 0.0
  %2877 = vmatpush1.msra.mxu0 %v97
  %2878 = vmatprep.subr.mxu0 0.0
  %2879 = vmatpush1.msra.mxu0 %v96
  %2880 = vmatprep.subr.mxu0 0.0
  %2881 = vmatpush1.msra.mxu0 %v95
  %2882 = vmatprep.subr.mxu0 0.0
  %2883 = vmatpush1.msra.mxu0 %v94
  %2884 = vmatprep.subr.mxu0 0.0
  %2885 = vmatpush1.msra.mxu0 %v93
  %2886 = vmatprep.subr.mxu0 0.0
  %2887 = vmatpush1.msra.mxu0 %v92
  %2888 = vmatprep.subr.mxu0 0.0
  %2889 = vmatpush1.msra.mxu0 %v91
  %2890 = vmatprep.subr.mxu0 0.0
  %2891 = vmatpush1.msra.mxu0 %v90
  %2892 = vmatprep.subr.mxu0 0.0
  %2893 = vmatpush1.msra.mxu0 %v89
  %2894 = vmatprep.subr.mxu0 0.0
  %2895 = vmatpush2.msra.mxu0 0.0
  %2896 = vmatprep.subr.mxu0 0.0
  %2897 = vmatpush2.msra.mxu0 0.0
  %2898 = vmatprep.subr.mxu0 0.0
  %2899 = vmatpush2.msra.mxu0 0.0
  %2900 = vmatprep.subr.mxu0 0.0
  %2901 = vmatpush2.msra.mxu0 0.0
  %2902 = vmatprep.subr.mxu0 0.0
  %2903 = vmatpush2.msra.mxu0 0.0
  %2904 = vmatprep.subr.mxu0 0.0
  %2905 = vmatpush2.msra.mxu0 0.0
  %2906 = vmatprep.subr.mxu0 0.0
  %2907 = vmatpush2.msra.mxu0 0.0
  %2908 = vmatprep.subr.mxu0 0.0
  %2909 = vmatpush2.msra.mxu0 0.0
  %2910 = vmatprep.subr.mxu0 0.0
  %2911 = vmatpush2.msra.mxu0 0.0
  %2912 = vmatprep.subr.mxu0 0.0
  %2913 = vmatpush2.msra.mxu0 0.0
  %2914 = vmatprep.subr.mxu0 0.0
  %2915 = vmatpush2.msra.mxu0 0.0
  %2916 = vmatprep.subr.mxu0 0.0
  %2917 = vmatpush2.msra.mxu0 0.0
  %2918 = vmatprep.subr.mxu0 0.0
  %2919 = vmatpush2.msra.mxu0 0.0
  %2920 = vmatprep.subr.mxu0 0.0
  %2921 = vmatpush2.msra.mxu0 0.0
  %2922 = vmatprep.subr.mxu0 0.0
  %2923 = vmatpush2.msra.mxu0 0.0
  %2924 = vmatprep.subr.mxu0 0.0
  %2925 = vmatpush2.msra.mxu0 0.0
  %2926 = vmatprep.mubr.f32.mxu0 0.0
  %2927 = vmatmul.mubr.f32.gmra.mxu0 %v2555
  %v2928 = vpop.f32.mrf.mxu0
  %v2929 = vadd.f32 0.0, %v2928
  %v2930 = vpop.f32.mrf.mxu0
  %2931 = vdwg.mxu0
  %2932 = vmatprep.subr.mxu0 0.0
  %2933 = vmatpush1.msra.mxu0 %v120
  %2934 = vmatprep.subr.mxu0 0.0
  %2935 = vmatpush1.msra.mxu0 %v119
  %2936 = vmatprep.subr.mxu0 0.0
  %2937 = vmatpush1.msra.mxu0 %v118
  %2938 = vmatprep.subr.mxu0 0.0
  %2939 = vmatpush1.msra.mxu0 %v117
  %2940 = vmatprep.subr.mxu0 0.0
  %2941 = vmatpush1.msra.mxu0 %v116
  %2942 = vmatprep.subr.mxu0 0.0
  %2943 = vmatpush1.msra.mxu0 %v115
  %2944 = vmatprep.subr.mxu0 0.0
  %2945 = vmatpush1.msra.mxu0 %v114
  %2946 = vmatprep.subr.mxu0 0.0
  %2947 = vmatpush1.msra.mxu0 %v113
  %2948 = vmatprep.subr.mxu0 0.0
  %2949 = vmatpush1.msra.mxu0 %v112
  %2950 = vmatprep.subr.mxu0 0.0
  %2951 = vmatpush1.msra.mxu0 %v111
  %2952 = vmatprep.subr.mxu0 0.0
  %2953 = vmatpush1.msra.mxu0 %v110
  %2954 = vmatprep.subr.mxu0 0.0
  %2955 = vmatpush1.msra.mxu0 %v109
  %2956 = vmatprep.subr.mxu0 0.0
  %2957 = vmatpush1.msra.mxu0 %v108
  %2958 = vmatprep.subr.mxu0 0.0
  %2959 = vmatpush1.msra.mxu0 %v107
  %2960 = vmatprep.subr.mxu0 0.0
  %2961 = vmatpush1.msra.mxu0 %v106
  %2962 = vmatprep.subr.mxu0 0.0
  %2963 = vmatpush1.msra.mxu0 %v105
  %2964 = vmatprep.subr.mxu0 0.0
  %2965 = vmatpush2.msra.mxu0 0.0
  %2966 = vmatprep.subr.mxu0 0.0
  %2967 = vmatpush2.msra.mxu0 0.0
  %2968 = vmatprep.subr.mxu0 0.0
  %2969 = vmatpush2.msra.mxu0 0.0
  %2970 = vmatprep.subr.mxu0 0.0
  %2971 = vmatpush2.msra.mxu0 0.0
  %2972 = vmatprep.subr.mxu0 0.0
  %2973 = vmatpush2.msra.mxu0 0.0
  %2974 = vmatprep.subr.mxu0 0.0
  %2975 = vmatpush2.msra.mxu0 0.0
  %2976 = vmatprep.subr.mxu0 0.0
  %2977 = vmatpush2.msra.mxu0 0.0
  %2978 = vmatprep.subr.mxu0 0.0
  %2979 = vmatpush2.msra.mxu0 0.0
  %2980 = vmatprep.subr.mxu0 0.0
  %2981 = vmatpush2.msra.mxu0 0.0
  %2982 = vmatprep.subr.mxu0 0.0
  %2983 = vmatpush2.msra.mxu0 0.0
  %2984 = vmatprep.subr.mxu0 0.0
  %2985 = vmatpush2.msra.mxu0 0.0
  %2986 = vmatprep.subr.mxu0 0.0
  %2987 = vmatpush2.msra.mxu0 0.0
  %2988 = vmatprep.subr.mxu0 0.0
  %2989 = vmatpush2.msra.mxu0 0.0
  %2990 = vmatprep.subr.mxu0 0.0
  %2991 = vmatpush2.msra.mxu0 0.0
  %2992 = vmatprep.subr.mxu0 0.0
  %2993 = vmatpush2.msra.mxu0 0.0
  %2994 = vmatprep.subr.mxu0 0.0
  %2995 = vmatpush2.msra.mxu0 0.0
  %2996 = vmatprep.mubr.f32.mxu0 0.0
  %2997 = vmatmul.mubr.f32.gmra.mxu0 %v2569
  %v2998 = vpop.f32.mrf.mxu0
  %v2999 = vadd.f32 0.0, %v2998
  %v3000 = vpop.f32.mrf.mxu0
  %3001 = vdwg.mxu0
  %3002 = vmatprep.subr.mxu0 0.0
  %3003 = vmatpush1.msra.mxu0 %v136
  %3004 = vmatprep.subr.mxu0 0.0
  %3005 = vmatpush1.msra.mxu0 %v135
  %3006 = vmatprep.subr.mxu0 0.0
  %3007 = vmatpush1.msra.mxu0 %v134
  %3008 = vmatprep.subr.mxu0 0.0
  %3009 = vmatpush1.msra.mxu0 %v133
  %3010 = vmatprep.subr.mxu0 0.0
  %3011 = vmatpush1.msra.mxu0 %v132
  %3012 = vmatprep.subr.mxu0 0.0
  %3013 = vmatpush1.msra.mxu0 %v131
  %3014 = vmatprep.subr.mxu0 0.0
  %3015 = vmatpush1.msra.mxu0 %v130
  %3016 = vmatprep.subr.mxu0 0.0
  %3017 = vmatpush1.msra.mxu0 %v129
  %3018 = vmatprep.subr.mxu0 0.0
  %3019 = vmatpush1.msra.mxu0 %v128
  %3020 = vmatprep.subr.mxu0 0.0
  %3021 = vmatpush1.msra.mxu0 %v127
  %3022 = vmatprep.subr.mxu0 0.0
  %3023 = vmatpush1.msra.mxu0 %v126
  %3024 = vmatprep.subr.mxu0 0.0
  %3025 = vmatpush1.msra.mxu0 %v125
  %3026 = vmatprep.subr.mxu0 0.0
  %3027 = vmatpush1.msra.mxu0 %v124
  %3028 = vmatprep.subr.mxu0 0.0
  %3029 = vmatpush1.msra.mxu0 %v123
  %3030 = vmatprep.subr.mxu0 0.0
  %3031 = vmatpush1.msra.mxu0 %v122
  %3032 = vmatprep.subr.mxu0 0.0
  %3033 = vmatpush1.msra.mxu0 %v121
  %3034 = vmatprep.subr.mxu0 0.0
  %3035 = vmatpush2.msra.mxu0 0.0
  %3036 = vmatprep.subr.mxu0 0.0
  %3037 = vmatpush2.msra.mxu0 0.0
  %3038 = vmatprep.subr.mxu0 0.0
  %3039 = vmatpush2.msra.mxu0 0.0
  %3040 = vmatprep.subr.mxu0 0.0
  %3041 = vmatpush2.msra.mxu0 0.0
  %3042 = vmatprep.subr.mxu0 0.0
  %3043 = vmatpush2.msra.mxu0 0.0
  %3044 = vmatprep.subr.mxu0 0.0
  %3045 = vmatpush2.msra.mxu0 0.0
  %3046 = vmatprep.subr.mxu0 0.0
  %3047 = vmatpush2.msra.mxu0 0.0
  %3048 = vmatprep.subr.mxu0 0.0
  %3049 = vmatpush2.msra.mxu0 0.0
  %3050 = vmatprep.subr.mxu0 0.0
  %3051 = vmatpush2.msra.mxu0 0.0
  %3052 = vmatprep.subr.mxu0 0.0
  %3053 = vmatpush2.msra.mxu0 0.0
  %3054 = vmatprep.subr.mxu0 0.0
  %3055 = vmatpush2.msra.mxu0 0.0
  %3056 = vmatprep.subr.mxu0 0.0
  %3057 = vmatpush2.msra.mxu0 0.0
  %3058 = vmatprep.subr.mxu0 0.0
  %3059 = vmatpush2.msra.mxu0 0.0
  %3060 = vmatprep.subr.mxu0 0.0
  %3061 = vmatpush2.msra.mxu0 0.0
  %3062 = vmatprep.subr.mxu0 0.0
  %3063 = vmatpush2.msra.mxu0 0.0
  %3064 = vmatprep.subr.mxu0 0.0
  %3065 = vmatpush2.msra.mxu0 0.0
  %3066 = vmatprep.mubr.f32.mxu0 0.0
  %3067 = vmatmul.mubr.f32.gmra.mxu0 %v2571
  %v3068 = vpop.f32.mrf.mxu0
  %v3069 = vadd.f32 0.0, %v3068
  %v3070 = vpop.f32.mrf.mxu0
  %3071 = vdwg.mxu0
  %3072 = vmatprep.subr.mxu0 0.0
  %3073 = vmatpush1.msra.mxu0 %v152
  %3074 = vmatprep.subr.mxu0 0.0
  %3075 = vmatpush1.msra.mxu0 %v151
  %3076 = vmatprep.subr.mxu0 0.0
  %3077 = vmatpush1.msra.mxu0 %v150
  %3078 = vmatprep.subr.mxu0 0.0
  %3079 = vmatpush1.msra.mxu0 %v149
  %3080 = vmatprep.subr.mxu0 0.0
  %3081 = vmatpush1.msra.mxu0 %v148
  %3082 = vmatprep.subr.mxu0 0.0
  %3083 = vmatpush1.msra.mxu0 %v147
  %3084 = vmatprep.subr.mxu0 0.0
  %3085 = vmatpush1.msra.mxu0 %v146
  %3086 = vmatprep.subr.mxu0 0.0
  %3087 = vmatpush1.msra.mxu0 %v145
  %3088 = vmatprep.subr.mxu0 0.0
  %3089 = vmatpush1.msra.mxu0 %v144
  %3090 = vmatprep.subr.mxu0 0.0
  %3091 = vmatpush1.msra.mxu0 %v143
  %3092 = vmatprep.subr.mxu0 0.0
  %3093 = vmatpush1.msra.mxu0 %v142
  %3094 = vmatprep.subr.mxu0 0.0
  %3095 = vmatpush1.msra.mxu0 %v141
  %3096 = vmatprep.subr.mxu0 0.0
  %3097 = vmatpush1.msra.mxu0 %v140
  %3098 = vmatprep.subr.mxu0 0.0
  %3099 = vmatpush1.msra.mxu0 %v139
  %3100 = vmatprep.subr.mxu0 0.0
  %3101 = vmatpush1.msra.mxu0 %v138
  %3102 = vmatprep.subr.mxu0 0.0
  %3103 = vmatpush1.msra.mxu0 %v137
  %3104 = vmatprep.subr.mxu0 0.0
  %3105 = vmatpush2.msra.mxu0 0.0
  %3106 = vmatprep.subr.mxu0 0.0
  %3107 = vmatpush2.msra.mxu0 0.0
  %3108 = vmatprep.subr.mxu0 0.0
  %3109 = vmatpush2.msra.mxu0 0.0
  %3110 = vmatprep.subr.mxu0 0.0
  %3111 = vmatpush2.msra.mxu0 0.0
  %3112 = vmatprep.subr.mxu0 0.0
  %3113 = vmatpush2.msra.mxu0 0.0
  %3114 = vmatprep.subr.mxu0 0.0
  %3115 = vmatpush2.msra.mxu0 0.0
  %3116 = vmatprep.subr.mxu0 0.0
  %3117 = vmatpush2.msra.mxu0 0.0
  %3118 = vmatprep.subr.mxu0 0.0
  %3119 = vmatpush2.msra.mxu0 0.0
  %3120 = vmatprep.subr.mxu0 0.0
  %3121 = vmatpush2.msra.mxu0 0.0
  %3122 = vmatprep.subr.mxu0 0.0
  %3123 = vmatpush2.msra.mxu0 0.0
  %3124 = vmatprep.subr.mxu0 0.0
  %3125 = vmatpush2.msra.mxu0 0.0
  %3126 = vmatprep.subr.mxu0 0.0
  %3127 = vmatpush2.msra.mxu0 0.0
  %3128 = vmatprep.subr.mxu0 0.0
  %3129 = vmatpush2.msra.mxu0 0.0
  %3130 = vmatprep.subr.mxu0 0.0
  %3131 = vmatpush2.msra.mxu0 0.0
  %3132 = vmatprep.subr.mxu0 0.0
  %3133 = vmatpush2.msra.mxu0 0.0
  %3134 = vmatprep.subr.mxu0 0.0
  %3135 = vmatpush2.msra.mxu0 0.0
  %3136 = vmatprep.mubr.f32.mxu0 0.0
  %3137 = vmatmul.mubr.f32.gmra.mxu0 %v2573
  %v3138 = vpop.f32.mrf.mxu0
  %v3139 = vadd.f32 0.0, %v3138
  %v3140 = vpop.f32.mrf.mxu0
  %3141 = vdwg.mxu0
  %v3150 = vrot.slane %v2719, 7
  %v3151 = vsel %vm2498, %v3150, %v2649
  %v3152 = vrot.slane %v2789, 6
  %v3153 = vsel %vm2500, %v3152, %v3151
  %v3154 = vrot.slane %v2859, 5
  %v3155 = vsel %vm2502, %v3154, %v3153
  %v3156 = vrot.slane %v2929, 4
  %v3157 = vsel %vm2504, %v3156, %v3155
  %v3158 = vrot.slane %v2999, 3
  %v3159 = vsel %vm2506, %v3158, %v3157
  %v3160 = vrot.slane %v3069, 2
  %v3161 = vsel %vm2508, %v3160, %v3159
  %v3162 = vrot.slane %v3139, 1
  %v3163 = vsel %vm2510, %v3162, %v3161
  %3165 = vst [vmem:[%s6] sm:$0xff] %v3163
  // Predicated region
  $region26: #{attention_pallas.1} parent=0 // pred_check
    _
  $region27: #{attention_pallas.1} parent=0 // pred_check_branch
    %3167 = sbr.rel (0) target = $region29
  $region28: #{attention_pallas.1} parent=0 // pred_region
    _
  $region29: #{attention_pallas.1} parent=0 // pred_fallthru
    _
  // Predicated region
  $region30: #{attention_pallas.1} parent=0 // pred_check
    _
  $region31: #{attention_pallas.1} parent=0 // pred_check_branch
    %3169 = sbr.rel (0) target = $region33
  $region32: #{attention_pallas.1} parent=0 // pred_region
    _
  $region33: #{attention_pallas.1} parent=0 // pred_fallthru
    _
  // Predicated region
  $region34: #{attention_pallas.1} parent=0 // pred_check
    _
  $region35: #{attention_pallas.1} parent=0 // pred_check_branch
    %3171 = sbr.rel (0) target = $region37
  $region36: #{attention_pallas.1} parent=0 // pred_region
    _
  $region37: #{attention_pallas.1} parent=0 // pred_fallthru
    _
  // Predicated region
  $region38: #{attention_pallas.1} parent=0 // pred_check
    _
  $region39: #{attention_pallas.1} parent=0 // pred_check_branch
    %3173 = sbr.rel (0) target = $region41
  $region40: #{attention_pallas.1} parent=0 // pred_region
    _
  $region41: #{attention_pallas.1} parent=0 // pred_fallthru
    _

</llo_original>
